<compile_context>
chip_gen: v6e
topology: v6e:2x2x1
jax: 0.10.0
libtpu: 0.0.40
codegen_flags: <defaults>
</compile_context>

<pallas_src>
import jax
import jax.numpy as jnp
from jax.experimental import pallas as pl
from jax.experimental.pallas import tpu as pltpu


def _elmo_kernel(ids_ref, table_ref, w_ref, b_ref, out_ref):
    # ids_ref   : (TM, 1)       int32  token ids for the packed rows (streamed)
    # table_ref : (Vp, D)       bf16   padded embedding table (VMEM-resident)
    # w_ref     : (D, L*D)      bf16   both layer projections, lane-concat (resident)
    # b_ref     : (1, L*D)      f32    both layer biases, lane-concat (resident)
    # out_ref   : (bb, L, T, D) f32    direct [B, L, T, D]-layout store
    bb, L, T, D = out_ref.shape
    TM = ids_ref.shape[0]
    Vp = table_ref.shape[0]

    ids = ids_ref[...]                                   # (TM, 1) int32
    keep = ids != 0                                      # (TM, 1) bool, in-kernel mask

    # In-kernel embedding gather as a one-hot MXU matmul (exact: each row of
    # `onehot` has a single 1.0, so the f32-accumulated result equals the
    # bf16 table row).
    iota = jax.lax.broadcasted_iota(jnp.int32, (TM, Vp), 1)
    onehot = (ids == iota).astype(jnp.bfloat16)          # (TM, Vp)
    emb = jnp.dot(onehot, table_ref[...],
                  preferred_element_type=jnp.float32)    # (TM, D) f32 == table rows
    emb = emb.astype(jnp.bfloat16)

    # Fused two-layer projection: one MXU matmul, 512-wide output lanes.
    y = jnp.dot(emb, w_ref[...],
                preferred_element_type=jnp.float32)      # (TM, L*D) f32
    y = jnp.where(keep, y + b_ref[...], 0.0)             # bias + exact-zero mask

    for l in range(L):                                   # L == 2, static unroll
        out_ref[:, l, :, :] = (
            y[:, l * D:(l + 1) * D].reshape(bb, T, D).astype(out_ref.dtype))


def _pick_bb(B, T, min_rows=512, max_rows=2048):
    """Pick bb (batch rows packed per grid step).

    Preference order:
      1. >= 2 grid blocks (feeds both v7x TensorCores via the "parallel" axis)
         AND TM = bb*T in [min_rows, max_rows] with TM % 16 == 0.
      2. >= 2 grid blocks, TM <= max_rows (largest such TM).
      3. single block, TM <= max_rows (largest such TM).
    """
    divisors = [d for d in range(1, B + 1) if B % d == 0]

    def rows_ok(d):
        return (d * T) % 16 == 0 and d * T <= max_rows

    cands = [d for d in divisors if B // d >= 2 and rows_ok(d)
             and d * T >= min_rows]
    if cands:
        return cands[-1]
    cands = [d for d in divisors if B // d >= 2 and rows_ok(d)]
    if cands:
        return cands[-1]
    cands = [d for d in divisors if rows_ok(d)]
    return cands[-1] if cands else 1


def _vmem_limit_bytes(TM, bb, Vp, D, L, T):
    """Per-step VMEM footprint estimate (double-buffered streams + residents)."""
    ids_b = 2 * TM * 4                       # double-buffered int32 ids
    out_b = 2 * bb * L * T * D * 4           # double-buffered f32 output block
    table_b = Vp * D * 2                     # resident bf16 table
    w_b = D * L * D * 2                      # resident bf16 weights
    bias_b = L * D * 4                       # resident f32 bias
    temps = TM * Vp * 4 + TM * L * D * 4     # one-hot + matmul result temps
    total = ids_b + out_b + table_b + w_b + bias_b + temps + (4 << 20)
    return int(min(max(total, 32 << 20), 64 << 20))


def encoder_elmo_forward(token_ids, embed_table, proj_w, proj_b,
                         out_dtype=jnp.float32):
    """Mimics Encoder_ELMo.forward (with the synthetic linear ELMo stand-in).

    token_ids   : int32 [B, T]      (0 == padding)
    embed_table : float32 [V, D]
    proj_w      : float32 [2, D, D]
    proj_b      : float32 [2, D]
    returns     : [B, 2, T, D]  masked ELMo representations (out_dtype)
    """
    B, T = token_ids.shape
    V, D = embed_table.shape
    L = proj_w.shape[0]                       # 2 output representations
    assert T % 8 == 0 and D % 128 == 0, "T must be a multiple of 8, D of 128"

    bb = _pick_bb(B, T)                       # batch rows packed per grid step
    TM = bb * T                               # matmul M per step
    grid = B // bb

    # Pad the vocab to a lane-friendly multiple of 128 (zeros never selected).
    Vp = max(128, ((V + 127) // 128) * 128)
    table = jnp.zeros((Vp, D), jnp.bfloat16).at[:V, :].set(
        embed_table.astype(jnp.bfloat16))

    # Concatenate the L layer projections along the output (lane) axis.
    w_cat = jnp.concatenate(
        [proj_w[l].astype(jnp.bfloat16) for l in range(L)], axis=1)   # (D, L*D)
    b_cat = proj_b.reshape(1, L * D).astype(jnp.float32)              # (1, L*D)

    ids = token_ids.reshape(B * T, 1).astype(jnp.int32)               # (N, 1)

    out = pl.pallas_call(
        _elmo_kernel,
        out_shape=jax.ShapeDtypeStruct((B, L, T, D), out_dtype),
        grid_spec=pl.GridSpec(
            grid=(grid,),
            in_specs=[
                pl.BlockSpec((TM, 1), lambda i: (i, 0)),        # ids (streamed)
                pl.BlockSpec((Vp, D), lambda i: (0, 0)),        # table, resident
                pl.BlockSpec((D, L * D), lambda i: (0, 0)),     # weights, resident
                pl.BlockSpec((1, L * D), lambda i: (0, 0)),     # bias, resident
            ],
            out_specs=pl.BlockSpec((bb, L, T, D), lambda i: (i, 0, 0, 0)),
        ),
        compiler_params=pltpu.CompilerParams(
            dimension_semantics=("parallel",),
            vmem_limit_bytes=_vmem_limit_bytes(TM, bb, Vp, D, L, T)),
    )(ids, table, w_cat, b_cat)
    return out


def reference_forward(token_ids, embed_table, proj_w, proj_b):
    """Pure-JAX reference mirroring the PyTorch wrapper semantics.

    Uses the same bf16 MXU operands / f32 accumulation as the kernel so the
    comparison is tight.
    """
    B, T = token_ids.shape
    D = embed_table.shape[1]
    L = proj_w.shape[0]
    emb = jnp.take(embed_table.astype(jnp.bfloat16), token_ids, axis=0)   # [B,T,D]
    reps = []
    for l in range(L):
        y = jnp.dot(emb.reshape(-1, D), proj_w[l].astype(jnp.bfloat16),
                    preferred_element_type=jnp.float32).reshape(B, T, D)
        reps.append(y + proj_b[l])
    stacked = jnp.stack(reps)                                             # [L,B,T,D]
    stacked = jnp.swapaxes(stacked, 0, 1)                                 # [B,L,T,D]
    mask = (token_ids != 0).astype(jnp.float32)                           # [B,T]
    mask = jnp.tile(mask, (1, 2)).reshape(B, 2, T)[..., None]             # [B,2,T,1]
    return stacked * mask


if __name__ == "__main__":
    # Small, deterministic shapes consistent with the module
    # (encoder_out_size = 256, two ELMo representations).
    B, T, D, V, L = 8, 64, 256, 50, 2

    key = jax.random.PRNGKey(0)
    k_tok, k_emb, k_w, k_b = jax.random.split(key, 4)

    # Token ids; id 0 is padding -> masked out.
    token_ids = jax.random.randint(k_tok, (B, T), 1, V, dtype=jnp.int32)
    token_ids = token_ids.at[1, -5:].set(0)
    token_ids = token_ids.at[5, -9:].set(0)

    embed_table = jax.random.normal(k_emb, (V, D), dtype=jnp.float32) * 0.1
    proj_w = jax.random.normal(k_w, (L, D, D), dtype=jnp.float32) * 0.05
    proj_b = jax.random.normal(k_b, (L, D), dtype=jnp.float32) * 0.01

    out = encoder_elmo_forward(token_ids, embed_table, proj_w, proj_b)
    out = jax.block_until_ready(out)

    ref = reference_forward(token_ids, embed_table, proj_w, proj_b)
    assert out.shape == (B, L, T, D), out.shape
    assert jnp.allclose(out, ref, atol=2e-3, rtol=2e-3), "mismatch vs reference"
    # Padded positions must be exactly zeroed by the in-kernel mask.
    assert jnp.all(out[1, :, -5:, :] == 0.0)
    assert jnp.all(out[5, :, -9:, :] == 0.0)

    print("KERNEL_OK")
</pallas_src>

<mosaic_0001>
module attributes {stable_mosaic.version = 11 : i64} {
  func.func @_elmo_kernel(%arg0: i32, %arg1: memref<256x1xi32, #tpu.memory_space<vmem>>, %arg2: memref<128x256xbf16, #tpu.memory_space<vmem>>, %arg3: memref<256x512xbf16, #tpu.memory_space<vmem>>, %arg4: memref<1x512xf32, #tpu.memory_space<vmem>>, %arg5: memref<4x2x64x256xf32, #tpu.memory_space<vmem>>) attributes {dimension_semantics = [#tpu.dimension_semantics<parallel>], iteration_bounds = array<i64: 2>, scalar_prefetch = 0 : i64, scratch_operands = 0 : i64, tpu.core_type = #tpu.core_type<tc>, window_params = [{transform_indices = @transform_0, window_bounds = array<i64: 256, 1>}, {pipeline_mode = #tpu.pipeline_mode<synchronous>, transform_indices = @transform_1, window_bounds = array<i64: 128, 256>}, {pipeline_mode = #tpu.pipeline_mode<synchronous>, transform_indices = @transform_2, window_bounds = array<i64: 256, 512>}, {pipeline_mode = #tpu.pipeline_mode<synchronous>, transform_indices = @transform_3, window_bounds = array<i64: 1, 512>}, {transform_indices = @transform_4, window_bounds = array<i64: 4, 2, 64, 256>}]} {
    %c0 = arith.constant 0 : index
    %c0_0 = arith.constant 0 : index
    %0 = vector.load %arg1[%c0, %c0_0] : memref<256x1xi32, #tpu.memory_space<vmem>>, vector<256x1xi32>
    %c0_i32 = arith.constant 0 : i32
    %1 = vector.broadcast %c0_i32 : i32 to vector<256x1xi32>
    %2 = arith.cmpi ne, %0, %1 : vector<256x1xi32>
    %3 = tpu.iota {dimensions = array<i32: 1>} : vector<256x128xi32>
    %4 = vector.broadcast %0 : vector<256x1xi32> to vector<256x128xi32>
    %5 = arith.cmpi eq, %4, %3 : vector<256x128xi32>
    %6 = arith.extui %5 : vector<256x128xi1> to vector<256x128xi32>
    %7 = arith.sitofp %6 : vector<256x128xi32> to vector<256x128xf32>
    %8 = arith.truncf %7 : vector<256x128xf32> to vector<256x128xbf16>
    %c0_1 = arith.constant 0 : index
    %c0_2 = arith.constant 0 : index
    %9 = vector.load %arg2[%c0_1, %c0_2] : memref<128x256xbf16, #tpu.memory_space<vmem>>, vector<128x256xbf16>
    %cst = arith.constant dense<0.000000e+00> : vector<256x256xf32>
    %10 = tpu.matmul %8, %9, %cst {dimension_numbers = #tpu.dot_dimension_numbers<[1], [0], [0], [1], [0, 0, 1, 1], [], []>} : vector<256x128xbf16>, vector<128x256xbf16>, vector<256x256xf32> -> vector<256x256xf32>
    %11 = arith.truncf %10 : vector<256x256xf32> to vector<256x256xbf16>
    %c0_3 = arith.constant 0 : index
    %c0_4 = arith.constant 0 : index
    %12 = vector.load %arg3[%c0_3, %c0_4] : memref<256x512xbf16, #tpu.memory_space<vmem>>, vector<256x512xbf16>
    %cst_5 = arith.constant dense<0.000000e+00> : vector<256x512xf32>
    %13 = tpu.matmul %11, %12, %cst_5 {dimension_numbers = #tpu.dot_dimension_numbers<[1], [0], [0], [1], [0, 0, 1, 1], [], []>} : vector<256x256xbf16>, vector<256x512xbf16>, vector<256x512xf32> -> vector<256x512xf32>
    %c0_6 = arith.constant 0 : index
    %c0_7 = arith.constant 0 : index
    %14 = vector.load %arg4[%c0_6, %c0_7] : memref<1x512xf32, #tpu.memory_space<vmem>>, vector<1x512xf32>
    %15 = vector.broadcast %14 : vector<1x512xf32> to vector<256x512xf32>
    %16 = arith.addf %13, %15 : vector<256x512xf32>
    %cst_8 = arith.constant 0.000000e+00 : f32
    %17 = vector.shape_cast %2 : vector<256x1xi1> to vector<256x1xi1>
    %18 = vector.broadcast %17 : vector<256x1xi1> to vector<256x512xi1>
    %19 = vector.broadcast %cst_8 : f32 to vector<256x512xf32>
    %20 = arith.select %18, %16, %19 : vector<256x512xi1>, vector<256x512xf32>
    %21 = vector.extract_strided_slice %20 {offsets = [0, 0], sizes = [256, 256], strides = [1, 1]} : vector<256x512xf32> to vector<256x256xf32>
    %22 = vector.shape_cast %21 : vector<256x256xf32> to vector<4x64x256xf32>
    %c0_9 = arith.constant 0 : index
    %c0_10 = arith.constant 0 : index
    %c0_11 = arith.constant 0 : index
    %c0_12 = arith.constant 0 : index
    %23 = vector.load %arg5[%c0_9, %c0_10, %c0_11, %c0_12] : memref<4x2x64x256xf32, #tpu.memory_space<vmem>>, vector<4x1x64x256xf32>
    %24 = vector.shape_cast %23 : vector<4x1x64x256xf32> to vector<4x64x256xf32>
    %25 = vector.shape_cast %22 : vector<4x64x256xf32> to vector<4x1x64x256xf32>
    tpu.vector_store %arg5[%c0_9, %c0_10, %c0_11, %c0_12], %25 {strides = array<i32>} : memref<4x2x64x256xf32, #tpu.memory_space<vmem>>, vector<4x1x64x256xf32>,
    %26 = vector.extract_strided_slice %20 {offsets = [0, 256], sizes = [256, 256], strides = [1, 1]} : vector<256x512xf32> to vector<256x256xf32>
    %27 = vector.shape_cast %26 : vector<256x256xf32> to vector<4x64x256xf32>
    %c0_13 = arith.constant 0 : index
    %c1 = arith.constant 1 : index
    %c0_14 = arith.constant 0 : index
    %c0_15 = arith.constant 0 : index
    %28 = vector.load %arg5[%c0_13, %c1, %c0_14, %c0_15] : memref<4x2x64x256xf32, #tpu.memory_space<vmem>>, vector<4x1x64x256xf32>
    %29 = vector.shape_cast %28 : vector<4x1x64x256xf32> to vector<4x64x256xf32>
    %30 = vector.shape_cast %27 : vector<4x64x256xf32> to vector<4x1x64x256xf32>
    tpu.vector_store %arg5[%c0_13, %c1, %c0_14, %c0_15], %30 {strides = array<i32>} : memref<4x2x64x256xf32, #tpu.memory_space<vmem>>, vector<4x1x64x256xf32>,
    return
  }
  func.func @transform_0(%arg0: i32) -> (i32, i32) {
    %c0_i32 = arith.constant 0 : i32
    %c0_i32_0 = arith.constant 0 : i32
    return %arg0, %c0_i32 : i32, i32
  }
  func.func @transform_1(%arg0: i32) -> (i32, i32) {
    %c0_i32 = arith.constant 0 : i32
    %c0_i32_0 = arith.constant 0 : i32
    %c0_i32_1 = arith.constant 0 : i32
    return %c0_i32, %c0_i32_0 : i32, i32
  }
  func.func @transform_2(%arg0: i32) -> (i32, i32) {
    %c0_i32 = arith.constant 0 : i32
    %c0_i32_0 = arith.constant 0 : i32
    %c0_i32_1 = arith.constant 0 : i32
    return %c0_i32, %c0_i32_0 : i32, i32
  }
  func.func @transform_3(%arg0: i32) -> (i32, i32) {
    %c0_i32 = arith.constant 0 : i32
    %c0_i32_0 = arith.constant 0 : i32
    %c0_i32_1 = arith.constant 0 : i32
    return %c0_i32, %c0_i32_0 : i32, i32
  }
  func.func @transform_4(%arg0: i32) -> (i32, i32, i32, i32) {
    %c0_i32 = arith.constant 0 : i32
    %c0_i32_0 = arith.constant 0 : i32
    %c0_i32_1 = arith.constant 0 : i32
    %c0_i32_2 = arith.constant 0 : i32
    return %arg0, %c0_i32, %c0_i32_0, %c0_i32_1 : i32, i32, i32, i32
  }
}

</mosaic_0001>

<llo_original>
// kernel: tpu_custom_call.1
$region0: #{tpu_custom_call.1}
  #allocation0 [shape = 'u32[]', space=smem, size = 0x4, offset = 0x4, fixed_abs, tag = 'smem constant byte address 0x4 - core index']
  #allocation1 [shape = 'u32[144,128]{1,0:T(1,128)}', space=vmem, size = 0x12000, scoped, tag = 'internal scratch']
  %s0 = inlined_call_operand.vmem [shape: s32[512,1], index: 0, kind: input, shape index: {}]
  %s1 = inlined_call_operand.hbm [shape: bf16[128,256], index: 1, kind: input, shape index: {}]
  %s2 = inlined_call_operand.vmem [shape: bf16[256,512], index: 2, kind: input, shape index: {}]
  %s3 = inlined_call_operand.vmem [shape: f32[1,512], index: 3, kind: input, shape index: {}]
  %s4 = inlined_call_operand.hbm [shape: f32[8,2,64,256], index: 4, kind: output, shape index: {}]
  %s5 = sld [smem:[#allocation0]]
  $region53: #{tpu_custom_call.1} parent=0
    _
  %s7 = ssub.s32 1, %s5
  %s8 = scalar_select 0, %s7, %s5
  $region1: #{tpu_custom_call.1} parent=0
    #allocation2 [shape = 'u8[65536]{0}', space=vmem, size = 0x10000, scoped, tag = 'input window, operand 1, single buffered']
    #allocation3 [shape = 's32[2]{0}', space=sflag, size = 0x8, scoped, tag = 'scoped memory for tpu_custom_call.1']
    #allocation4 [shape = 's32[2]{0}', space=sflag, size = 0x8, scoped, tag = 'scoped memory for tpu_custom_call.1']
    #allocation5 [shape = 'u8[1048576]{0}', space=vmem, size = 0x100000, scoped, tag = 'output window, operand 0']
    %9 = vsyncpa [#allocation3], 0
    %10 = vsyncpa [#allocation4], 0
    %s11 = scalar_lea.sflag [#allocation4], 1
    %12 = vsyncpa %s11, 0
    loop: start=0, step=1, limit=4
    $region2: #{tpu_custom_call.1} parent=1 // loop_pre_header
      _
    $region3: #{tpu_custom_call.1} parent=1 // loop_header
      %s14 = sphi 0, %s18
      %p15 = scmp.ge.s32.totalorder %s14, 4
      %s24 = sphi 0, %s26
      %s27 = sphi 0, %s24
      %s28 = sphi 0, %s27
      %s44 = sphi 0, %s28
      %s48 = sphi 0, %s48
      %s50 = sphi 0, %s48
      %s51 = sphi 0, %s50
      %s65 = sphi 0, %s51
      %s69 = sphi 0, %s69
      %s71 = sphi 0, %s69
      %s72 = sphi 0, %s71
      %s86 = sphi 0, %s72
      %s90 = sphi 0, %s90
      %s92 = sphi 0, %s90
      %s93 = sphi 0, %s92
      %s107 = sphi 0, %s93
      %s113 = sphi 0, %s115
      %s116 = sphi 0, %s113
      %s117 = sphi 0, %s116
      %s133 = sphi 0, %s117
    $region4: #{tpu_custom_call.1} parent=1 // loop_header_branch
      %17 = sbr.rel (%p15) target = $region8
    $region5: #{tpu_custom_call.1} parent=1 // loop_body
      %s19 = ssub.s32 %s14, 1
      %s20 = ssub.s32 %s14, 2
      %s21 = sadd.s32 %s14, 1
      %s22 = ssub.s32 %s14, %s21
      %p23 = scmp.eq.s32.totalorder %s22, 0
      %s25 = sadd.s32 %s24, 1
      %s26 = scalar_select %p23, %s24, %s25
      %p29 = pneg %p23
      %p30 = scmp.eq.s32.totalorder %s14, 1
      %p31 = por %p29, %p30
      %p32 = scmp.ne.s32.totalorder %s24, %s27
      %p33 = scmp.eq.s32.totalorder %s14, 0
      %p34 = por %p32, %p33
      %p35 = scmp.ne.s32.totalorder %s24, %s27
      %p36 = scmp.eq.s32.totalorder %s19, 1
      %p37 = por %p35, %p36
      %p38 = scmp.ne.s32.totalorder %s27, %s28
      %p39 = scmp.eq.s32.totalorder %s19, 0
      %p40 = por %p38, %p39
      %p41 = scmp.ne.s32.totalorder %s27, %s28
      %p42 = scmp.eq.s32.totalorder %s20, 1
      %p43 = por %p41, %p42
      %p45 = scmp.ne.s32.totalorder %s28, %s44
      %p46 = scmp.eq.s32.totalorder %s20, 0
      %p47 = por %p45, %p46
      %s49 = sadd.s32 %s48, 1
      %p52 = scmp.eq.s32.totalorder %s14, 1
      %p53 = scmp.ne.s32.totalorder %s48, %s50
      %p54 = scmp.eq.s32.totalorder %s14, 0
      %p55 = por %p53, %p54
      %p56 = scmp.ne.s32.totalorder %s48, %s50
      %p57 = scmp.eq.s32.totalorder %s19, 1
      %p58 = por %p56, %p57
      %p59 = scmp.ne.s32.totalorder %s50, %s51
      %p60 = scmp.eq.s32.totalorder %s19, 0
      %p61 = por %p59, %p60
      %p62 = scmp.ne.s32.totalorder %s50, %s51
      %p63 = scmp.eq.s32.totalorder %s20, 1
      %p64 = por %p62, %p63
      %p66 = scmp.ne.s32.totalorder %s51, %s65
      %p67 = scmp.eq.s32.totalorder %s20, 0
      %p68 = por %p66, %p67
      %s70 = sadd.s32 %s69, 1
      %p73 = scmp.eq.s32.totalorder %s14, 1
      %p74 = scmp.ne.s32.totalorder %s69, %s71
      %p75 = scmp.eq.s32.totalorder %s14, 0
      %p76 = por %p74, %p75
      %p77 = scmp.ne.s32.totalorder %s69, %s71
      %p78 = scmp.eq.s32.totalorder %s19, 1
      %p79 = por %p77, %p78
      %p80 = scmp.ne.s32.totalorder %s71, %s72
      %p81 = scmp.eq.s32.totalorder %s19, 0
      %p82 = por %p80, %p81
      %p83 = scmp.ne.s32.totalorder %s71, %s72
      %p84 = scmp.eq.s32.totalorder %s20, 1
      %p85 = por %p83, %p84
      %p87 = scmp.ne.s32.totalorder %s72, %s86
      %p88 = scmp.eq.s32.totalorder %s20, 0
      %p89 = por %p87, %p88
      %s91 = sadd.s32 %s90, 1
      %p94 = scmp.eq.s32.totalorder %s14, 1
      %p95 = scmp.ne.s32.totalorder %s90, %s92
      %p96 = scmp.eq.s32.totalorder %s14, 0
      %p97 = por %p95, %p96
      %p98 = scmp.ne.s32.totalorder %s90, %s92
      %p99 = scmp.eq.s32.totalorder %s19, 1
      %p100 = por %p98, %p99
      %p101 = scmp.ne.s32.totalorder %s92, %s93
      %p102 = scmp.eq.s32.totalorder %s19, 0
      %p103 = por %p101, %p102
      %p104 = scmp.ne.s32.totalorder %s92, %s93
      %p105 = scmp.eq.s32.totalorder %s20, 1
      %p106 = por %p104, %p105
      %p108 = scmp.ne.s32.totalorder %s93, %s107
      %p109 = scmp.eq.s32.totalorder %s20, 0
      %p110 = por %p108, %p109
      %s111 = ssub.s32 %s14, %s21
      %p112 = scmp.eq.s32.totalorder %s111, 0
      %s114 = sadd.s32 %s113, 1
      %s115 = scalar_select %p112, %s113, %s114
      %p118 = pneg %p112
      %p119 = scmp.eq.s32.totalorder %s14, 1
      %p120 = por %p118, %p119
      %p121 = scmp.ne.s32.totalorder %s113, %s116
      %p122 = scmp.eq.s32.totalorder %s14, 0
      %p123 = por %p121, %p122
      %p124 = scmp.ne.s32.totalorder %s113, %s116
      %p125 = scmp.eq.s32.totalorder %s19, 1
      %p126 = por %p124, %p125
      %p127 = scmp.ne.s32.totalorder %s116, %s117
      %p128 = scmp.eq.s32.totalorder %s19, 0
      %p129 = por %p127, %p128
      %p130 = scmp.ne.s32.totalorder %s116, %s117
      %p131 = scmp.eq.s32.totalorder %s20, 1
      %p132 = por %p130, %p131
      %p134 = scmp.ne.s32.totalorder %s117, %s133
      %p135 = scmp.eq.s32.totalorder %s20, 0
      %p136 = por %p134, %p135
      %p137 = scmp.le.s32.totalorder 1, %s14
      %p138 = scmp.lt.s32.totalorder %s14, 3
      %p139 = pnand %p137, %p138
      %p140 = pneg %p139
      // Predicated region
      $region9: #{tpu_custom_call.1} parent=5 // pred_check
        _
      $region10: #{tpu_custom_call.1} parent=5 // pred_check_branch
        %142 = sbr.rel (%p139) target = $region12
      $region11: #{tpu_custom_call.1} parent=5 // pred_region
        %s143 = ssub.s32 %s14, 1
        // Predicated region
        $region13: #{tpu_custom_call.1} parent=11 // pred_check
          %p144 = pneg %p61
        $region14: #{tpu_custom_call.1} parent=11 // pred_check_branch
          %146 = sbr.rel (%p144) target = $region16
        $region15: #{tpu_custom_call.1} parent=11 // pred_region
          %s148 = ssub.s32 2048, 2048
          %149 = vsyncadd [#allocation3], %s148
          %s150 = sshll.u32 [#allocation2], 4
          %s151 = int_to_ptr.vmem [resolvable:$true] %s150
          %156 = dma.hbm_to_vmem [thread:$0]  %s1, 2048, %s151, [#allocation3], 128, 128, 8
        $region16: #{tpu_custom_call.1} parent=11 // pred_fallthru
          _
        // Predicated region
        $region17: #{tpu_custom_call.1} parent=11 // pred_check
          %p157 = pneg %p82
        $region18: #{tpu_custom_call.1} parent=11 // pred_check_branch
          %159 = sbr.rel (%p157) target = $region20
        $region19: #{tpu_custom_call.1} parent=11 // pred_region
          _
        $region20: #{tpu_custom_call.1} parent=11 // pred_fallthru
          _
        // Predicated region
        $region21: #{tpu_custom_call.1} parent=11 // pred_check
          %p160 = pneg %p103
        $region22: #{tpu_custom_call.1} parent=11 // pred_check_branch
          %162 = sbr.rel (%p160) target = $region24
        $region23: #{tpu_custom_call.1} parent=11 // pred_region
          _
        $region24: #{tpu_custom_call.1} parent=11 // pred_fallthru
          _
      $region12: #{tpu_custom_call.1} parent=5 // pred_fallthru
        _
      %p163 = scmp.lt.s32.totalorder %s14, 2
      // Predicated region
      $region25: #{tpu_custom_call.1} parent=5 // pred_check
        %p164 = pneg %p163
      $region26: #{tpu_custom_call.1} parent=5 // pred_check_branch
        %166 = sbr.rel (%p164) target = $region28
      $region27: #{tpu_custom_call.1} parent=5 // pred_region
        // Predicated region
        $region29: #{tpu_custom_call.1} parent=27 // pred_check
          %p167 = pneg %p34
        $region30: #{tpu_custom_call.1} parent=27 // pred_check_branch
          %169 = sbr.rel (%p167) target = $region32
        $region31: #{tpu_custom_call.1} parent=27 // pred_region
          %s170 = smul.u32 32, %s14
          %p171 = scmp.lt.s32.totalorder %s170, 63
          %s172 = scalar_select %p171, %s170, 63
          %s173 = smul.addr %s172, 8
          %s174 = scalar_lea.vmem %s0, %s173
          %s175 = smul.u32 32, %s14
        $region32: #{tpu_custom_call.1} parent=27 // pred_fallthru
          _
      $region28: #{tpu_custom_call.1} parent=5 // pred_fallthru
        _
      %p176 = scmp.le.s32.totalorder 1, %s14
      %p177 = scmp.lt.s32.totalorder %s14, 3
      %p178 = pnand %p176, %p177
      %p179 = pneg %p178
      // Predicated region
      $region33: #{tpu_custom_call.1} parent=5 // pred_check
        _
      $region34: #{tpu_custom_call.1} parent=5 // pred_check_branch
        %181 = sbr.rel (%p178) target = $region36
      $region35: #{tpu_custom_call.1} parent=5 // pred_region
        %s182 = ssub.s32 %s14, 1
        // Predicated region
        $region37: #{tpu_custom_call.1} parent=35 // pred_check
          %p183 = pneg %p61
        $region38: #{tpu_custom_call.1} parent=35 // pred_check_branch
          %185 = sbr.rel (%p183) target = $region40
        $region39: #{tpu_custom_call.1} parent=35 // pred_region
          %186 = dma.done [#allocation3], 2048
        $region40: #{tpu_custom_call.1} parent=35 // pred_fallthru
          _
        %s187 = smul.u32 32, %s19
        %p188 = scmp.lt.s32.totalorder %s187, 63
        %s189 = scalar_select %p188, %s187, 63
        %s190 = smul.addr %s189, 8
        %s191 = scalar_lea.vmem %s0, %s190
        %p192 = pneg %p40
        %p193 = pneg %p37
        %p194 = pneg %p61
        %p195 = pneg %p58
        %p196 = pneg %p82
        %p197 = pneg %p79
        %p198 = pneg %p103
        %p199 = pneg %p100
        %p200 = pneg %p129
        %p201 = pneg %p126
        %s202 = sand.u32 %s116, 1
        %s203 = scalar_lea.sflag [#allocation4], %s202
        %s204 = sand.u32 %s116, 1
        %s205 = smul.addr %s204, 1024
        %s206 = scalar_lea.vmem [#allocation5], %s205
        %s207 = smul.u32 32, %s19
        %p208 = scmp.lt.s32.totalorder %s207, 63
        %s209 = scalar_select %p208, %s207, 63
        %s210 = smul.addr %s209, 8
        %s211 = scalar_lea.vmem %s0, %s210
        %s212 = smul.u32 32, %s19
        %s213 = smul.u32 4, %s19
        %v215 = vld [vmem:[%s211] sm:$0xff]
        %v216 = vld [vmem:[%s211 + $0x8] sm:$0xff]
        %v217 = vld [vmem:[%s211 + $0x10] sm:$0xff]
        %v218 = vld [vmem:[%s211 + $0x18] sm:$0xff]
        %v219 = vld [vmem:[%s211 + $0x20] sm:$0xff]
        %v220 = vld [vmem:[%s211 + $0x28] sm:$0xff]
        %v221 = vld [vmem:[%s211 + $0x30] sm:$0xff]
        %v222 = vld [vmem:[%s211 + $0x38] sm:$0xff]
        %v223 = vld [vmem:[%s211 + $0x40] sm:$0xff]
        %v224 = vld [vmem:[%s211 + $0x48] sm:$0xff]
        %v225 = vld [vmem:[%s211 + $0x50] sm:$0xff]
        %v226 = vld [vmem:[%s211 + $0x58] sm:$0xff]
        %v227 = vld [vmem:[%s211 + $0x60] sm:$0xff]
        %v228 = vld [vmem:[%s211 + $0x68] sm:$0xff]
        %v229 = vld [vmem:[%s211 + $0x70] sm:$0xff]
        %v230 = vld [vmem:[%s211 + $0x78] sm:$0xff]
        %v231 = vld [vmem:[%s211 + $0x80] sm:$0xff]
        %v232 = vld [vmem:[%s211 + $0x88] sm:$0xff]
        %v233 = vld [vmem:[%s211 + $0x90] sm:$0xff]
        %v234 = vld [vmem:[%s211 + $0x98] sm:$0xff]
        %v235 = vld [vmem:[%s211 + $0xa0] sm:$0xff]
        %v236 = vld [vmem:[%s211 + $0xa8] sm:$0xff]
        %v237 = vld [vmem:[%s211 + $0xb0] sm:$0xff]
        %v238 = vld [vmem:[%s211 + $0xb8] sm:$0xff]
        %v239 = vld [vmem:[%s211 + $0xc0] sm:$0xff]
        %v240 = vld [vmem:[%s211 + $0xc8] sm:$0xff]
        %v241 = vld [vmem:[%s211 + $0xd0] sm:$0xff]
        %v242 = vld [vmem:[%s211 + $0xd8] sm:$0xff]
        %v243 = vld [vmem:[%s211 + $0xe0] sm:$0xff]
        %v244 = vld [vmem:[%s211 + $0xe8] sm:$0xff]
        %v245 = vld [vmem:[%s211 + $0xf0] sm:$0xff]
        %v246 = vld [vmem:[%s211 + $0xf8] sm:$0xff]
        %vm247 = vcmp.ne.s32.totalorder %v215, 0
        %vm248 = vcmp.ne.s32.totalorder %v216, 0
        %vm249 = vcmp.ne.s32.totalorder %v217, 0
        %vm250 = vcmp.ne.s32.totalorder %v218, 0
        %vm251 = vcmp.ne.s32.totalorder %v219, 0
        %vm252 = vcmp.ne.s32.totalorder %v220, 0
        %vm253 = vcmp.ne.s32.totalorder %v221, 0
        %vm254 = vcmp.ne.s32.totalorder %v222, 0
        %vm255 = vcmp.ne.s32.totalorder %v223, 0
        %vm256 = vcmp.ne.s32.totalorder %v224, 0
        %vm257 = vcmp.ne.s32.totalorder %v225, 0
        %vm258 = vcmp.ne.s32.totalorder %v226, 0
        %vm259 = vcmp.ne.s32.totalorder %v227, 0
        %vm260 = vcmp.ne.s32.totalorder %v228, 0
        %vm261 = vcmp.ne.s32.totalorder %v229, 0
        %vm262 = vcmp.ne.s32.totalorder %v230, 0
        %vm263 = vcmp.ne.s32.totalorder %v231, 0
        %vm264 = vcmp.ne.s32.totalorder %v232, 0
        %vm265 = vcmp.ne.s32.totalorder %v233, 0
        %vm266 = vcmp.ne.s32.totalorder %v234, 0
        %vm267 = vcmp.ne.s32.totalorder %v235, 0
        %vm268 = vcmp.ne.s32.totalorder %v236, 0
        %vm269 = vcmp.ne.s32.totalorder %v237, 0
        %vm270 = vcmp.ne.s32.totalorder %v238, 0
        %vm271 = vcmp.ne.s32.totalorder %v239, 0
        %vm272 = vcmp.ne.s32.totalorder %v240, 0
        %vm273 = vcmp.ne.s32.totalorder %v241, 0
        %vm274 = vcmp.ne.s32.totalorder %v242, 0
        %vm275 = vcmp.ne.s32.totalorder %v243, 0
        %vm276 = vcmp.ne.s32.totalorder %v244, 0
        %vm277 = vcmp.ne.s32.totalorder %v245, 0
        %vm278 = vcmp.ne.s32.totalorder %v246, 0
        %v279 = vlaneseq
        %v280 = vand.u32 %v279, 127
        %281 = vset.pattern.permute.xlu0 0
        %282 = vperm.xlu0 %281, %v215
        %v283 = vpop.permute.xlu0 %282
        %284 = vset.pattern.permute.xlu0 0
        %285 = vperm.xlu0 %284, %v216
        %v286 = vpop.permute.xlu0 %285
        %287 = vset.pattern.permute.xlu0 0
        %288 = vperm.xlu0 %287, %v217
        %v289 = vpop.permute.xlu0 %288
        %290 = vset.pattern.permute.xlu0 0
        %291 = vperm.xlu0 %290, %v218
        %v292 = vpop.permute.xlu0 %291
        %293 = vset.pattern.permute.xlu0 0
        %294 = vperm.xlu0 %293, %v219
        %v295 = vpop.permute.xlu0 %294
        %296 = vset.pattern.permute.xlu0 0
        %297 = vperm.xlu0 %296, %v220
        %v298 = vpop.permute.xlu0 %297
        %299 = vset.pattern.permute.xlu0 0
        %300 = vperm.xlu0 %299, %v221
        %v301 = vpop.permute.xlu0 %300
        %302 = vset.pattern.permute.xlu0 0
        %303 = vperm.xlu0 %302, %v222
        %v304 = vpop.permute.xlu0 %303
        %305 = vset.pattern.permute.xlu0 0
        %306 = vperm.xlu0 %305, %v223
        %v307 = vpop.permute.xlu0 %306
        %308 = vset.pattern.permute.xlu0 0
        %309 = vperm.xlu0 %308, %v224
        %v310 = vpop.permute.xlu0 %309
        %311 = vset.pattern.permute.xlu0 0
        %312 = vperm.xlu0 %311, %v225
        %v313 = vpop.permute.xlu0 %312
        %314 = vset.pattern.permute.xlu0 0
        %315 = vperm.xlu0 %314, %v226
        %v316 = vpop.permute.xlu0 %315
        %317 = vset.pattern.permute.xlu0 0
        %318 = vperm.xlu0 %317, %v227
        %v319 = vpop.permute.xlu0 %318
        %320 = vset.pattern.permute.xlu0 0
        %321 = vperm.xlu0 %320, %v228
        %v322 = vpop.permute.xlu0 %321
        %323 = vset.pattern.permute.xlu0 0
        %324 = vperm.xlu0 %323, %v229
        %v325 = vpop.permute.xlu0 %324
        %326 = vset.pattern.permute.xlu0 0
        %327 = vperm.xlu0 %326, %v230
        %v328 = vpop.permute.xlu0 %327
        %329 = vset.pattern.permute.xlu0 0
        %330 = vperm.xlu0 %329, %v231
        %v331 = vpop.permute.xlu0 %330
        %332 = vset.pattern.permute.xlu0 0
        %333 = vperm.xlu0 %332, %v232
        %v334 = vpop.permute.xlu0 %333
        %335 = vset.pattern.permute.xlu0 0
        %336 = vperm.xlu0 %335, %v233
        %v337 = vpop.permute.xlu0 %336
        %338 = vset.pattern.permute.xlu0 0
        %339 = vperm.xlu0 %338, %v234
        %v340 = vpop.permute.xlu0 %339
        %341 = vset.pattern.permute.xlu0 0
        %342 = vperm.xlu0 %341, %v235
        %v343 = vpop.permute.xlu0 %342
        %344 = vset.pattern.permute.xlu0 0
        %345 = vperm.xlu0 %344, %v236
        %v346 = vpop.permute.xlu0 %345
        %347 = vset.pattern.permute.xlu0 0
        %348 = vperm.xlu0 %347, %v237
        %v349 = vpop.permute.xlu0 %348
        %350 = vset.pattern.permute.xlu0 0
        %351 = vperm.xlu0 %350, %v238
        %v352 = vpop.permute.xlu0 %351
        %353 = vset.pattern.permute.xlu0 0
        %354 = vperm.xlu0 %353, %v239
        %v355 = vpop.permute.xlu0 %354
        %356 = vset.pattern.permute.xlu0 0
        %357 = vperm.xlu0 %356, %v240
        %v358 = vpop.permute.xlu0 %357
        %359 = vset.pattern.permute.xlu0 0
        %360 = vperm.xlu0 %359, %v241
        %v361 = vpop.permute.xlu0 %360
        %362 = vset.pattern.permute.xlu0 0
        %363 = vperm.xlu0 %362, %v242
        %v364 = vpop.permute.xlu0 %363
        %365 = vset.pattern.permute.xlu0 0
        %366 = vperm.xlu0 %365, %v243
        %v367 = vpop.permute.xlu0 %366
        %368 = vset.pattern.permute.xlu0 0
        %369 = vperm.xlu0 %368, %v244
        %v370 = vpop.permute.xlu0 %369
        %371 = vset.pattern.permute.xlu0 0
        %372 = vperm.xlu0 %371, %v245
        %v373 = vpop.permute.xlu0 %372
        %374 = vset.pattern.permute.xlu0 0
        %375 = vperm.xlu0 %374, %v246
        %v376 = vpop.permute.xlu0 %375
        %vm377 = vcmp.eq.s32.totalorder %v283, %v280
        %vm378 = vcmp.eq.s32.totalorder %v286, %v280
        %vm379 = vcmp.eq.s32.totalorder %v289, %v280
        %vm380 = vcmp.eq.s32.totalorder %v292, %v280
        %vm381 = vcmp.eq.s32.totalorder %v295, %v280
        %vm382 = vcmp.eq.s32.totalorder %v298, %v280
        %vm383 = vcmp.eq.s32.totalorder %v301, %v280
        %vm384 = vcmp.eq.s32.totalorder %v304, %v280
        %vm385 = vcmp.eq.s32.totalorder %v307, %v280
        %vm386 = vcmp.eq.s32.totalorder %v310, %v280
        %vm387 = vcmp.eq.s32.totalorder %v313, %v280
        %vm388 = vcmp.eq.s32.totalorder %v316, %v280
        %vm389 = vcmp.eq.s32.totalorder %v319, %v280
        %vm390 = vcmp.eq.s32.totalorder %v322, %v280
        %vm391 = vcmp.eq.s32.totalorder %v325, %v280
        %vm392 = vcmp.eq.s32.totalorder %v328, %v280
        %vm393 = vcmp.eq.s32.totalorder %v331, %v280
        %vm394 = vcmp.eq.s32.totalorder %v334, %v280
        %vm395 = vcmp.eq.s32.totalorder %v337, %v280
        %vm396 = vcmp.eq.s32.totalorder %v340, %v280
        %vm397 = vcmp.eq.s32.totalorder %v343, %v280
        %vm398 = vcmp.eq.s32.totalorder %v346, %v280
        %vm399 = vcmp.eq.s32.totalorder %v349, %v280
        %vm400 = vcmp.eq.s32.totalorder %v352, %v280
        %vm401 = vcmp.eq.s32.totalorder %v355, %v280
        %vm402 = vcmp.eq.s32.totalorder %v358, %v280
        %vm403 = vcmp.eq.s32.totalorder %v361, %v280
        %vm404 = vcmp.eq.s32.totalorder %v364, %v280
        %vm405 = vcmp.eq.s32.totalorder %v367, %v280
        %vm406 = vcmp.eq.s32.totalorder %v370, %v280
        %vm407 = vcmp.eq.s32.totalorder %v373, %v280
        %vm408 = vcmp.eq.s32.totalorder %v376, %v280
        %v409 = vsel %vm377, 1, 0
        %v410 = vsel %vm378, 1, 0
        %v411 = vsel %vm379, 1, 0
        %v412 = vsel %vm380, 1, 0
        %v413 = vsel %vm381, 1, 0
        %v414 = vsel %vm382, 1, 0
        %v415 = vsel %vm383, 1, 0
        %v416 = vsel %vm384, 1, 0
        %v417 = vsel %vm385, 1, 0
        %v418 = vsel %vm386, 1, 0
        %v419 = vsel %vm387, 1, 0
        %v420 = vsel %vm388, 1, 0
        %v421 = vsel %vm389, 1, 0
        %v422 = vsel %vm390, 1, 0
        %v423 = vsel %vm391, 1, 0
        %v424 = vsel %vm392, 1, 0
        %v425 = vsel %vm393, 1, 0
        %v426 = vsel %vm394, 1, 0
        %v427 = vsel %vm395, 1, 0
        %v428 = vsel %vm396, 1, 0
        %v429 = vsel %vm397, 1, 0
        %v430 = vsel %vm398, 1, 0
        %v431 = vsel %vm399, 1, 0
        %v432 = vsel %vm400, 1, 0
        %v433 = vsel %vm401, 1, 0
        %v434 = vsel %vm402, 1, 0
        %v435 = vsel %vm403, 1, 0
        %v436 = vsel %vm404, 1, 0
        %v437 = vsel %vm405, 1, 0
        %v438 = vsel %vm406, 1, 0
        %v439 = vsel %vm407, 1, 0
        %v440 = vsel %vm408, 1, 0
        %v441 = vcvt.s32.f32 %v409
        %v442 = vcvt.s32.f32 %v410
        %v443 = vcvt.s32.f32 %v411
        %v444 = vcvt.s32.f32 %v412
        %v445 = vcvt.s32.f32 %v413
        %v446 = vcvt.s32.f32 %v414
        %v447 = vcvt.s32.f32 %v415
        %v448 = vcvt.s32.f32 %v416
        %v449 = vcvt.s32.f32 %v417
        %v450 = vcvt.s32.f32 %v418
        %v451 = vcvt.s32.f32 %v419
        %v452 = vcvt.s32.f32 %v420
        %v453 = vcvt.s32.f32 %v421
        %v454 = vcvt.s32.f32 %v422
        %v455 = vcvt.s32.f32 %v423
        %v456 = vcvt.s32.f32 %v424
        %v457 = vcvt.s32.f32 %v425
        %v458 = vcvt.s32.f32 %v426
        %v459 = vcvt.s32.f32 %v427
        %v460 = vcvt.s32.f32 %v428
        %v461 = vcvt.s32.f32 %v429
        %v462 = vcvt.s32.f32 %v430
        %v463 = vcvt.s32.f32 %v431
        %v464 = vcvt.s32.f32 %v432
        %v465 = vcvt.s32.f32 %v433
        %v466 = vcvt.s32.f32 %v434
        %v467 = vcvt.s32.f32 %v435
        %v468 = vcvt.s32.f32 %v436
        %v469 = vcvt.s32.f32 %v437
        %v470 = vcvt.s32.f32 %v438
        %v471 = vcvt.s32.f32 %v439
        %v472 = vcvt.s32.f32 %v440
        %v473 = vpack.c.bf16 %v442, %v441
        %v474 = vpack.c.bf16 %v444, %v443
        %v475 = vpack.c.bf16 %v446, %v445
        %v476 = vpack.c.bf16 %v448, %v447
        %v477 = vpack.c.bf16 %v450, %v449
        %v478 = vpack.c.bf16 %v452, %v451
        %v479 = vpack.c.bf16 %v454, %v453
        %v480 = vpack.c.bf16 %v456, %v455
        %v481 = vpack.c.bf16 %v458, %v457
        %v482 = vpack.c.bf16 %v460, %v459
        %v483 = vpack.c.bf16 %v462, %v461
        %v484 = vpack.c.bf16 %v464, %v463
        %v485 = vpack.c.bf16 %v466, %v465
        %v486 = vpack.c.bf16 %v468, %v467
        %v487 = vpack.c.bf16 %v470, %v469
        %v488 = vpack.c.bf16 %v472, %v471
        %v489 = vld [vmem:[#allocation2] sm:$0xff]
        %v490 = vld [vmem:[#allocation2 + $0x8] sm:$0xff]
        %v491 = vld [vmem:[#allocation2 + $0x10] sm:$0xff]
        %v492 = vld [vmem:[#allocation2 + $0x18] sm:$0xff]
        %v493 = vld [vmem:[#allocation2 + $0x20] sm:$0xff]
        %v494 = vld [vmem:[#allocation2 + $0x28] sm:$0xff]
        %v495 = vld [vmem:[#allocation2 + $0x30] sm:$0xff]
        %v496 = vld [vmem:[#allocation2 + $0x38] sm:$0xff]
        %v497 = vld [vmem:[#allocation2 + $0x40] sm:$0xff]
        %v498 = vld [vmem:[#allocation2 + $0x48] sm:$0xff]
        %v499 = vld [vmem:[#allocation2 + $0x50] sm:$0xff]
        %v500 = vld [vmem:[#allocation2 + $0x58] sm:$0xff]
        %v501 = vld [vmem:[#allocation2 + $0x60] sm:$0xff]
        %v502 = vld [vmem:[#allocation2 + $0x68] sm:$0xff]
        %v503 = vld [vmem:[#allocation2 + $0x70] sm:$0xff]
        %v504 = vld [vmem:[#allocation2 + $0x78] sm:$0xff]
        %v521 = vunpack.c.l.b16 %v489
        %v522 = vunpack.c.h.b16 %v489
        %v523 = vunpack.c.l.b16 %v490
        %v524 = vunpack.c.h.b16 %v490
        %v525 = vunpack.c.l.b16 %v491
        %v526 = vunpack.c.h.b16 %v491
        %v527 = vunpack.c.l.b16 %v492
        %v528 = vunpack.c.h.b16 %v492
        %v529 = vunpack.c.l.b16 %v493
        %v530 = vunpack.c.h.b16 %v493
        %v531 = vunpack.c.l.b16 %v494
        %v532 = vunpack.c.h.b16 %v494
        %v533 = vunpack.c.l.b16 %v495
        %v534 = vunpack.c.h.b16 %v495
        %v535 = vunpack.c.l.b16 %v496
        %v536 = vunpack.c.h.b16 %v496
        %v537 = vunpack.c.l.b16 %v497
        %v538 = vunpack.c.h.b16 %v497
        %v539 = vunpack.c.l.b16 %v498
        %v540 = vunpack.c.h.b16 %v498
        %v541 = vunpack.c.l.b16 %v499
        %v542 = vunpack.c.h.b16 %v499
        %v543 = vunpack.c.l.b16 %v500
        %v544 = vunpack.c.h.b16 %v500
        %v545 = vunpack.c.l.b16 %v501
        %v546 = vunpack.c.h.b16 %v501
        %v547 = vunpack.c.l.b16 %v502
        %v548 = vunpack.c.h.b16 %v502
        %v549 = vunpack.c.l.b16 %v503
        %v550 = vunpack.c.h.b16 %v503
        %v551 = vunpack.c.l.b16 %v504
        %v552 = vunpack.c.h.b16 %v504
        %v553 = vpack.c.b16 %v523, %v521
        %v554 = vpack.c.b16 %v524, %v522
        %v555 = vpack.c.b16 %v527, %v525
        %v556 = vpack.c.b16 %v528, %v526
        %v557 = vpack.c.b16 %v531, %v529
        %v558 = vpack.c.b16 %v532, %v530
        %v559 = vpack.c.b16 %v535, %v533
        %v560 = vpack.c.b16 %v536, %v534
        %v561 = vpack.c.b16 %v539, %v537
        %v562 = vpack.c.b16 %v540, %v538
        %v563 = vpack.c.b16 %v543, %v541
        %v564 = vpack.c.b16 %v544, %v542
        %v565 = vpack.c.b16 %v547, %v545
        %v566 = vpack.c.b16 %v548, %v546
        %v567 = vpack.c.b16 %v551, %v549
        %v568 = vpack.c.b16 %v552, %v550
        %585 = vmatprep.subr.bf16.mxu0 %v568
        %586 = vmatpush1.bf16.msra.mxu0 %v567
        %587 = vmatprep.subr.bf16.mxu0 %v566
        %588 = vmatpush1.bf16.msra.mxu0 %v565
        %589 = vmatprep.subr.bf16.mxu0 %v564
        %590 = vmatpush1.bf16.msra.mxu0 %v563
        %591 = vmatprep.subr.bf16.mxu0 %v562
        %592 = vmatpush1.bf16.msra.mxu0 %v561
        %593 = vmatprep.subr.bf16.mxu0 %v560
        %594 = vmatpush1.bf16.msra.mxu0 %v559
        %595 = vmatprep.subr.bf16.mxu0 %v558
        %596 = vmatpush1.bf16.msra.mxu0 %v557
        %597 = vmatprep.subr.bf16.mxu0 %v556
        %598 = vmatpush1.bf16.msra.mxu0 %v555
        %599 = vmatprep.subr.bf16.mxu0 %v554
        %600 = vmatpush1.bf16.msra.mxu0 %v553
        %601 = vmatprep.subr.bf16.mxu0 0
        %602 = vmatpush2.bf16.msra.mxu0 0
        %603 = vmatprep.subr.bf16.mxu0 0
        %604 = vmatpush2.bf16.msra.mxu0 0
        %605 = vmatprep.subr.bf16.mxu0 0
        %606 = vmatpush2.bf16.msra.mxu0 0
        %607 = vmatprep.subr.bf16.mxu0 0
        %608 = vmatpush2.bf16.msra.mxu0 0
        %609 = vmatprep.subr.bf16.mxu0 0
        %610 = vmatpush2.bf16.msra.mxu0 0
        %611 = vmatprep.subr.bf16.mxu0 0
        %612 = vmatpush2.bf16.msra.mxu0 0
        %613 = vmatprep.subr.bf16.mxu0 0
        %614 = vmatpush2.bf16.msra.mxu0 0
        %615 = vmatprep.subr.bf16.mxu0 0
        %616 = vmatpush2.bf16.msra.mxu0 0
        %617 = vmatprep.mubr.bf16.mxu0 0
        %618 = vmatmul.mubr.bf16.gmra.mxu0 %v473
        %v619 = vpop.f32.mrf.mxu0
        %v620 = vadd.f32 0.0, %v619
        %v621 = vpop.f32.mrf.mxu0
        %v622 = vadd.f32 0.0, %v621
        %v623 = vpop.f32.mrf.mxu0
        %v624 = vadd.f32 0.0, %v623
        %v625 = vpop.f32.mrf.mxu0
        %v626 = vadd.f32 0.0, %v625
        %627 = vmatprep.mubr.bf16.mxu0 0
        %628 = vmatmul.mubr.bf16.gmra.mxu0 %v474
        %v629 = vpop.f32.mrf.mxu0
        %v630 = vadd.f32 0.0, %v629
        %v631 = vpop.f32.mrf.mxu0
        %v632 = vadd.f32 0.0, %v631
        %v633 = vpop.f32.mrf.mxu0
        %v634 = vadd.f32 0.0, %v633
        %v635 = vpop.f32.mrf.mxu0
        %v636 = vadd.f32 0.0, %v635
        %637 = vmatprep.mubr.bf16.mxu0 0
        %638 = vmatmul.mubr.bf16.gmra.mxu0 %v475
        %v639 = vpop.f32.mrf.mxu0
        %v640 = vadd.f32 0.0, %v639
        %v641 = vpop.f32.mrf.mxu0
        %v642 = vadd.f32 0.0, %v641
        %v643 = vpop.f32.mrf.mxu0
        %v644 = vadd.f32 0.0, %v643
        %v645 = vpop.f32.mrf.mxu0
        %v646 = vadd.f32 0.0, %v645
        %647 = vmatprep.mubr.bf16.mxu0 0
        %648 = vmatmul.mubr.bf16.gmra.mxu0 %v476
        %v649 = vpop.f32.mrf.mxu0
        %v650 = vadd.f32 0.0, %v649
        %v651 = vpop.f32.mrf.mxu0
        %v652 = vadd.f32 0.0, %v651
        %v653 = vpop.f32.mrf.mxu0
        %v654 = vadd.f32 0.0, %v653
        %v655 = vpop.f32.mrf.mxu0
        %v656 = vadd.f32 0.0, %v655
        %657 = vmatprep.mubr.bf16.mxu0 0
        %658 = vmatmul.mubr.bf16.gmra.mxu0 %v477
        %v659 = vpop.f32.mrf.mxu0
        %v660 = vadd.f32 0.0, %v659
        %v661 = vpop.f32.mrf.mxu0
        %v662 = vadd.f32 0.0, %v661
        %v663 = vpop.f32.mrf.mxu0
        %v664 = vadd.f32 0.0, %v663
        %v665 = vpop.f32.mrf.mxu0
        %v666 = vadd.f32 0.0, %v665
        %667 = vmatprep.mubr.bf16.mxu0 0
        %668 = vmatmul.mubr.bf16.gmra.mxu0 %v478
        %v669 = vpop.f32.mrf.mxu0
        %v670 = vadd.f32 0.0, %v669
        %v671 = vpop.f32.mrf.mxu0
        %v672 = vadd.f32 0.0, %v671
        %v673 = vpop.f32.mrf.mxu0
        %v674 = vadd.f32 0.0, %v673
        %v675 = vpop.f32.mrf.mxu0
        %v676 = vadd.f32 0.0, %v675
        %677 = vmatprep.mubr.bf16.mxu0 0
        %678 = vmatmul.mubr.bf16.gmra.mxu0 %v479
        %v679 = vpop.f32.mrf.mxu0
        %v680 = vadd.f32 0.0, %v679
        %v681 = vpop.f32.mrf.mxu0
        %v682 = vadd.f32 0.0, %v681
        %v683 = vpop.f32.mrf.mxu0
        %v684 = vadd.f32 0.0, %v683
        %v685 = vpop.f32.mrf.mxu0
        %v686 = vadd.f32 0.0, %v685
        %687 = vmatprep.mubr.bf16.mxu0 0
        %688 = vmatmul.mubr.bf16.gmra.mxu0 %v480
        %v689 = vpop.f32.mrf.mxu0
        %v690 = vadd.f32 0.0, %v689
        %v691 = vpop.f32.mrf.mxu0
        %v692 = vadd.f32 0.0, %v691
        %v693 = vpop.f32.mrf.mxu0
        %v694 = vadd.f32 0.0, %v693
        %v695 = vpop.f32.mrf.mxu0
        %v696 = vadd.f32 0.0, %v695
        %697 = vmatprep.mubr.bf16.mxu0 0
        %698 = vmatmul.mubr.bf16.gmra.mxu0 %v481
        %v699 = vpop.f32.mrf.mxu0
        %v700 = vadd.f32 0.0, %v699
        %v701 = vpop.f32.mrf.mxu0
        %v702 = vadd.f32 0.0, %v701
        %v703 = vpop.f32.mrf.mxu0
        %v704 = vadd.f32 0.0, %v703
        %v705 = vpop.f32.mrf.mxu0
        %v706 = vadd.f32 0.0, %v705
        %707 = vmatprep.mubr.bf16.mxu0 0
        %708 = vmatmul.mubr.bf16.gmra.mxu0 %v482
        %v709 = vpop.f32.mrf.mxu0
        %v710 = vadd.f32 0.0, %v709
        %v711 = vpop.f32.mrf.mxu0
        %v712 = vadd.f32 0.0, %v711
        %v713 = vpop.f32.mrf.mxu0
        %v714 = vadd.f32 0.0, %v713
        %v715 = vpop.f32.mrf.mxu0
        %v716 = vadd.f32 0.0, %v715
        %717 = vmatprep.mubr.bf16.mxu0 0
        %718 = vmatmul.mubr.bf16.gmra.mxu0 %v483
        %v719 = vpop.f32.mrf.mxu0
        %v720 = vadd.f32 0.0, %v719
        %v721 = vpop.f32.mrf.mxu0
        %v722 = vadd.f32 0.0, %v721
        %v723 = vpop.f32.mrf.mxu0
        %v724 = vadd.f32 0.0, %v723
        %v725 = vpop.f32.mrf.mxu0
        %v726 = vadd.f32 0.0, %v725
        %727 = vmatprep.mubr.bf16.mxu0 0
        %728 = vmatmul.mubr.bf16.gmra.mxu0 %v484
        %v729 = vpop.f32.mrf.mxu0
        %v730 = vadd.f32 0.0, %v729
        %v731 = vpop.f32.mrf.mxu0
        %v732 = vadd.f32 0.0, %v731
        %v733 = vpop.f32.mrf.mxu0
        %v734 = vadd.f32 0.0, %v733
        %v735 = vpop.f32.mrf.mxu0
        %v736 = vadd.f32 0.0, %v735
        %737 = vmatprep.mubr.bf16.mxu0 0
        %738 = vmatmul.mubr.bf16.gmra.mxu0 %v485
        %v739 = vpop.f32.mrf.mxu0
        %v740 = vadd.f32 0.0, %v739
        %v741 = vpop.f32.mrf.mxu0
        %v742 = vadd.f32 0.0, %v741
        %v743 = vpop.f32.mrf.mxu0
        %v744 = vadd.f32 0.0, %v743
        %v745 = vpop.f32.mrf.mxu0
        %v746 = vadd.f32 0.0, %v745
        %747 = vmatprep.mubr.bf16.mxu0 0
        %748 = vmatmul.mubr.bf16.gmra.mxu0 %v486
        %v749 = vpop.f32.mrf.mxu0
        %v750 = vadd.f32 0.0, %v749
        %v751 = vpop.f32.mrf.mxu0
        %v752 = vadd.f32 0.0, %v751
        %v753 = vpop.f32.mrf.mxu0
        %v754 = vadd.f32 0.0, %v753
        %v755 = vpop.f32.mrf.mxu0
        %v756 = vadd.f32 0.0, %v755
        %757 = vmatprep.mubr.bf16.mxu0 0
        %758 = vmatmul.mubr.bf16.gmra.mxu0 %v487
        %v759 = vpop.f32.mrf.mxu0
        %v760 = vadd.f32 0.0, %v759
        %v761 = vpop.f32.mrf.mxu0
        %v762 = vadd.f32 0.0, %v761
        %v763 = vpop.f32.mrf.mxu0
        %v764 = vadd.f32 0.0, %v763
        %v765 = vpop.f32.mrf.mxu0
        %v766 = vadd.f32 0.0, %v765
        %767 = vmatprep.mubr.bf16.mxu0 0
        %768 = vmatmul.mubr.bf16.gmra.mxu0 %v488
        %v769 = vpop.f32.mrf.mxu0
        %v770 = vadd.f32 0.0, %v769
        %v771 = vpop.f32.mrf.mxu0
        %v772 = vadd.f32 0.0, %v771
        %v773 = vpop.f32.mrf.mxu0
        %v774 = vadd.f32 0.0, %v773
        %v775 = vpop.f32.mrf.mxu0
        %v776 = vadd.f32 0.0, %v775
        %777 = vdwg.mxu0
        %v778 = vpack.c.bf16 %v624, %v620
        %v779 = vpack.c.bf16 %v626, %v622
        %v780 = vpack.c.bf16 %v634, %v630
        %v781 = vpack.c.bf16 %v636, %v632
        %v782 = vpack.c.bf16 %v644, %v640
        %v783 = vpack.c.bf16 %v646, %v642
        %v784 = vpack.c.bf16 %v654, %v650
        %v785 = vpack.c.bf16 %v656, %v652
        %v786 = vpack.c.bf16 %v664, %v660
        %v787 = vpack.c.bf16 %v666, %v662
        %v788 = vpack.c.bf16 %v674, %v670
        %v789 = vpack.c.bf16 %v676, %v672
        %v790 = vpack.c.bf16 %v684, %v680
        %v791 = vpack.c.bf16 %v686, %v682
        %v792 = vpack.c.bf16 %v694, %v690
        %v793 = vpack.c.bf16 %v696, %v692
        %v794 = vpack.c.bf16 %v704, %v700
        %v795 = vpack.c.bf16 %v706, %v702
        %v796 = vpack.c.bf16 %v714, %v710
        %v797 = vpack.c.bf16 %v716, %v712
        %v798 = vpack.c.bf16 %v724, %v720
        %v799 = vpack.c.bf16 %v726, %v722
        %v800 = vpack.c.bf16 %v734, %v730
        %v801 = vpack.c.bf16 %v736, %v732
        %v802 = vpack.c.bf16 %v744, %v740
        %v803 = vpack.c.bf16 %v746, %v742
        %v804 = vpack.c.bf16 %v754, %v750
        %v805 = vpack.c.bf16 %v756, %v752
        %v806 = vpack.c.bf16 %v764, %v760
        %v807 = vpack.c.bf16 %v766, %v762
        %v808 = vpack.c.bf16 %v774, %v770
        %v809 = vpack.c.bf16 %v776, %v772
        %v810 = vld [vmem:[%s2] sm:$0xff]
        %v811 = vld [vmem:[%s2 + $0x8] sm:$0xff]
        %v812 = vld [vmem:[%s2 + $0x10] sm:$0xff]
        %v813 = vld [vmem:[%s2 + $0x18] sm:$0xff]
        %v814 = vld [vmem:[%s2 + $0x20] sm:$0xff]
        %v815 = vld [vmem:[%s2 + $0x28] sm:$0xff]
        %v816 = vld [vmem:[%s2 + $0x30] sm:$0xff]
        %v817 = vld [vmem:[%s2 + $0x38] sm:$0xff]
        %v818 = vld [vmem:[%s2 + $0x40] sm:$0xff]
        %v819 = vld [vmem:[%s2 + $0x48] sm:$0xff]
        %v820 = vld [vmem:[%s2 + $0x50] sm:$0xff]
        %v821 = vld [vmem:[%s2 + $0x58] sm:$0xff]
        %v822 = vld [vmem:[%s2 + $0x60] sm:$0xff]
        %v823 = vld [vmem:[%s2 + $0x68] sm:$0xff]
        %v824 = vld [vmem:[%s2 + $0x70] sm:$0xff]
        %v825 = vld [vmem:[%s2 + $0x78] sm:$0xff]
        %v826 = vld [vmem:[%s2 + $0x80] sm:$0xff]
        %v827 = vld [vmem:[%s2 + $0x88] sm:$0xff]
        %v828 = vld [vmem:[%s2 + $0x90] sm:$0xff]
        %v829 = vld [vmem:[%s2 + $0x98] sm:$0xff]
        %v830 = vld [vmem:[%s2 + $0xa0] sm:$0xff]
        %v831 = vld [vmem:[%s2 + $0xa8] sm:$0xff]
        %v832 = vld [vmem:[%s2 + $0xb0] sm:$0xff]
        %v833 = vld [vmem:[%s2 + $0xb8] sm:$0xff]
        %v834 = vld [vmem:[%s2 + $0xc0] sm:$0xff]
        %v835 = vld [vmem:[%s2 + $0xc8] sm:$0xff]
        %v836 = vld [vmem:[%s2 + $0xd0] sm:$0xff]
        %v837 = vld [vmem:[%s2 + $0xd8] sm:$0xff]
        %v838 = vld [vmem:[%s2 + $0xe0] sm:$0xff]
        %v839 = vld [vmem:[%s2 + $0xe8] sm:$0xff]
        %v840 = vld [vmem:[%s2 + $0xf0] sm:$0xff]
        %v841 = vld [vmem:[%s2 + $0xf8] sm:$0xff]
        %v842 = vld [vmem:[%s2 + $0x100] sm:$0xff]
        %v843 = vld [vmem:[%s2 + $0x108] sm:$0xff]
        %v844 = vld [vmem:[%s2 + $0x110] sm:$0xff]
        %v845 = vld [vmem:[%s2 + $0x118] sm:$0xff]
        %v846 = vld [vmem:[%s2 + $0x120] sm:$0xff]
        %v847 = vld [vmem:[%s2 + $0x128] sm:$0xff]
        %v848 = vld [vmem:[%s2 + $0x130] sm:$0xff]
        %v849 = vld [vmem:[%s2 + $0x138] sm:$0xff]
        %v850 = vld [vmem:[%s2 + $0x140] sm:$0xff]
        %v851 = vld [vmem:[%s2 + $0x148] sm:$0xff]
        %v852 = vld [vmem:[%s2 + $0x150] sm:$0xff]
        %v853 = vld [vmem:[%s2 + $0x158] sm:$0xff]
        %v854 = vld [vmem:[%s2 + $0x160] sm:$0xff]
        %v855 = vld [vmem:[%s2 + $0x168] sm:$0xff]
        %v856 = vld [vmem:[%s2 + $0x170] sm:$0xff]
        %v857 = vld [vmem:[%s2 + $0x178] sm:$0xff]
        %v858 = vld [vmem:[%s2 + $0x180] sm:$0xff]
        %v859 = vld [vmem:[%s2 + $0x188] sm:$0xff]
        %v860 = vld [vmem:[%s2 + $0x190] sm:$0xff]
        %v861 = vld [vmem:[%s2 + $0x198] sm:$0xff]
        %v862 = vld [vmem:[%s2 + $0x1a0] sm:$0xff]
        %v863 = vld [vmem:[%s2 + $0x1a8] sm:$0xff]
        %v864 = vld [vmem:[%s2 + $0x1b0] sm:$0xff]
        %v865 = vld [vmem:[%s2 + $0x1b8] sm:$0xff]
        %v866 = vld [vmem:[%s2 + $0x1c0] sm:$0xff]
        %v867 = vld [vmem:[%s2 + $0x1c8] sm:$0xff]
        %v868 = vld [vmem:[%s2 + $0x1d0] sm:$0xff]
        %v869 = vld [vmem:[%s2 + $0x1d8] sm:$0xff]
        %v870 = vld [vmem:[%s2 + $0x1e0] sm:$0xff]
        %v871 = vld [vmem:[%s2 + $0x1e8] sm:$0xff]
        %v872 = vld [vmem:[%s2 + $0x1f0] sm:$0xff]
        %v873 = vld [vmem:[%s2 + $0x1f8] sm:$0xff]
        %v874 = vld [vmem:[%s3] sm:$0xf]
        %v876 = vlaneseq
        %v877 = vshrl.u32 %v876, 7
        %v878 = vsub.s32 0, %v877
        %v879 = vrot.slane %v874, %v878
        %v880 = vlaneseq
        %v881 = vshrl.u32 %v880, 7
        %v882 = vsub.s32 1, %v881
        %v883 = vrot.slane %v874, %v882
        %v884 = vlaneseq
        %v885 = vshrl.u32 %v884, 7
        %v886 = vsub.s32 2, %v885
        %v887 = vrot.slane %v874, %v886
        %v888 = vlaneseq
        %v889 = vshrl.u32 %v888, 7
        %v890 = vsub.s32 3, %v889
        %v891 = vrot.slane %v874, %v890
        %v960 = vunpack.c.l.b16 %v810
        %v961 = vunpack.c.h.b16 %v810
        %v962 = vunpack.c.l.b16 %v811
        %v963 = vunpack.c.h.b16 %v811
        %v964 = vunpack.c.l.b16 %v812
        %v965 = vunpack.c.h.b16 %v812
        %v966 = vunpack.c.l.b16 %v813
        %v967 = vunpack.c.h.b16 %v813
        %v968 = vunpack.c.l.b16 %v814
        %v969 = vunpack.c.h.b16 %v814
        %v970 = vunpack.c.l.b16 %v815
        %v971 = vunpack.c.h.b16 %v815
        %v972 = vunpack.c.l.b16 %v816
        %v973 = vunpack.c.h.b16 %v816
        %v974 = vunpack.c.l.b16 %v817
        %v975 = vunpack.c.h.b16 %v817
        %v976 = vunpack.c.l.b16 %v818
        %v977 = vunpack.c.h.b16 %v818
        %v978 = vunpack.c.l.b16 %v819
        %v979 = vunpack.c.h.b16 %v819
        %v980 = vunpack.c.l.b16 %v820
        %v981 = vunpack.c.h.b16 %v820
        %v982 = vunpack.c.l.b16 %v821
        %v983 = vunpack.c.h.b16 %v821
        %v984 = vunpack.c.l.b16 %v822
        %v985 = vunpack.c.h.b16 %v822
        %v986 = vunpack.c.l.b16 %v823
        %v987 = vunpack.c.h.b16 %v823
        %v988 = vunpack.c.l.b16 %v824
        %v989 = vunpack.c.h.b16 %v824
        %v990 = vunpack.c.l.b16 %v825
        %v991 = vunpack.c.h.b16 %v825
        %v992 = vunpack.c.l.b16 %v826
        %v993 = vunpack.c.h.b16 %v826
        %v994 = vunpack.c.l.b16 %v827
        %v995 = vunpack.c.h.b16 %v827
        %v996 = vunpack.c.l.b16 %v828
        %v997 = vunpack.c.h.b16 %v828
        %v998 = vunpack.c.l.b16 %v829
        %v999 = vunpack.c.h.b16 %v829
        %v1000 = vunpack.c.l.b16 %v830
        %v1001 = vunpack.c.h.b16 %v830
        %v1002 = vunpack.c.l.b16 %v831
        %v1003 = vunpack.c.h.b16 %v831
        %v1004 = vunpack.c.l.b16 %v832
        %v1005 = vunpack.c.h.b16 %v832
        %v1006 = vunpack.c.l.b16 %v833
        %v1007 = vunpack.c.h.b16 %v833
        %v1008 = vunpack.c.l.b16 %v834
        %v1009 = vunpack.c.h.b16 %v834
        %v1010 = vunpack.c.l.b16 %v835
        %v1011 = vunpack.c.h.b16 %v835
        %v1012 = vunpack.c.l.b16 %v836
        %v1013 = vunpack.c.h.b16 %v836
        %v1014 = vunpack.c.l.b16 %v837
        %v1015 = vunpack.c.h.b16 %v837
        %v1016 = vunpack.c.l.b16 %v838
        %v1017 = vunpack.c.h.b16 %v838
        %v1018 = vunpack.c.l.b16 %v839
        %v1019 = vunpack.c.h.b16 %v839
        %v1020 = vunpack.c.l.b16 %v840
        %v1021 = vunpack.c.h.b16 %v840
        %v1022 = vunpack.c.l.b16 %v841
        %v1023 = vunpack.c.h.b16 %v841
        %v1024 = vunpack.c.l.b16 %v842
        %v1025 = vunpack.c.h.b16 %v842
        %v1026 = vunpack.c.l.b16 %v843
        %v1027 = vunpack.c.h.b16 %v843
        %v1028 = vunpack.c.l.b16 %v844
        %v1029 = vunpack.c.h.b16 %v844
        %v1030 = vunpack.c.l.b16 %v845
        %v1031 = vunpack.c.h.b16 %v845
        %v1032 = vunpack.c.l.b16 %v846
        %v1033 = vunpack.c.h.b16 %v846
        %v1034 = vunpack.c.l.b16 %v847
        %v1035 = vunpack.c.h.b16 %v847
        %v1036 = vunpack.c.l.b16 %v848
        %v1037 = vunpack.c.h.b16 %v848
        %v1038 = vunpack.c.l.b16 %v849
        %v1039 = vunpack.c.h.b16 %v849
        %v1040 = vunpack.c.l.b16 %v850
        %v1041 = vunpack.c.h.b16 %v850
        %v1042 = vunpack.c.l.b16 %v851
        %v1043 = vunpack.c.h.b16 %v851
        %v1044 = vunpack.c.l.b16 %v852
        %v1045 = vunpack.c.h.b16 %v852
        %v1046 = vunpack.c.l.b16 %v853
        %v1047 = vunpack.c.h.b16 %v853
        %v1048 = vunpack.c.l.b16 %v854
        %v1049 = vunpack.c.h.b16 %v854
        %v1050 = vunpack.c.l.b16 %v855
        %v1051 = vunpack.c.h.b16 %v855
        %v1052 = vunpack.c.l.b16 %v856
        %v1053 = vunpack.c.h.b16 %v856
        %v1054 = vunpack.c.l.b16 %v857
        %v1055 = vunpack.c.h.b16 %v857
        %v1056 = vunpack.c.l.b16 %v858
        %v1057 = vunpack.c.h.b16 %v858
        %v1058 = vunpack.c.l.b16 %v859
        %v1059 = vunpack.c.h.b16 %v859
        %v1060 = vunpack.c.l.b16 %v860
        %v1061 = vunpack.c.h.b16 %v860
        %v1062 = vunpack.c.l.b16 %v861
        %v1063 = vunpack.c.h.b16 %v861
        %v1064 = vunpack.c.l.b16 %v862
        %v1065 = vunpack.c.h.b16 %v862
        %v1066 = vunpack.c.l.b16 %v863
        %v1067 = vunpack.c.h.b16 %v863
        %v1068 = vunpack.c.l.b16 %v864
        %v1069 = vunpack.c.h.b16 %v864
        %v1070 = vunpack.c.l.b16 %v865
        %v1071 = vunpack.c.h.b16 %v865
        %v1072 = vunpack.c.l.b16 %v866
        %v1073 = vunpack.c.h.b16 %v866
        %v1074 = vunpack.c.l.b16 %v867
        %v1075 = vunpack.c.h.b16 %v867
        %v1076 = vunpack.c.l.b16 %v868
        %v1077 = vunpack.c.h.b16 %v868
        %v1078 = vunpack.c.l.b16 %v869
        %v1079 = vunpack.c.h.b16 %v869
        %v1080 = vunpack.c.l.b16 %v870
        %v1081 = vunpack.c.h.b16 %v870
        %v1082 = vunpack.c.l.b16 %v871
        %v1083 = vunpack.c.h.b16 %v871
        %v1084 = vunpack.c.l.b16 %v872
        %v1085 = vunpack.c.h.b16 %v872
        %v1086 = vunpack.c.l.b16 %v873
        %v1087 = vunpack.c.h.b16 %v873
        %v1088 = vpack.c.b16 %v964, %v960
        %v1089 = vpack.c.b16 %v965, %v961
        %v1090 = vpack.c.b16 %v966, %v962
        %v1091 = vpack.c.b16 %v967, %v963
        %v1092 = vpack.c.b16 %v972, %v968
        %v1093 = vpack.c.b16 %v973, %v969
        %v1094 = vpack.c.b16 %v974, %v970
        %v1095 = vpack.c.b16 %v975, %v971
        %v1096 = vpack.c.b16 %v980, %v976
        %v1097 = vpack.c.b16 %v981, %v977
        %v1098 = vpack.c.b16 %v982, %v978
        %v1099 = vpack.c.b16 %v983, %v979
        %v1100 = vpack.c.b16 %v988, %v984
        %v1101 = vpack.c.b16 %v989, %v985
        %v1102 = vpack.c.b16 %v990, %v986
        %v1103 = vpack.c.b16 %v991, %v987
        %v1104 = vpack.c.b16 %v996, %v992
        %v1105 = vpack.c.b16 %v997, %v993
        %v1106 = vpack.c.b16 %v998, %v994
        %v1107 = vpack.c.b16 %v999, %v995
        %v1108 = vpack.c.b16 %v1004, %v1000
        %v1109 = vpack.c.b16 %v1005, %v1001
        %v1110 = vpack.c.b16 %v1006, %v1002
        %v1111 = vpack.c.b16 %v1007, %v1003
        %v1112 = vpack.c.b16 %v1012, %v1008
        %v1113 = vpack.c.b16 %v1013, %v1009
        %v1114 = vpack.c.b16 %v1014, %v1010
        %v1115 = vpack.c.b16 %v1015, %v1011
        %v1116 = vpack.c.b16 %v1020, %v1016
        %v1117 = vpack.c.b16 %v1021, %v1017
        %v1118 = vpack.c.b16 %v1022, %v1018
        %v1119 = vpack.c.b16 %v1023, %v1019
        %v1120 = vpack.c.b16 %v1028, %v1024
        %v1121 = vpack.c.b16 %v1029, %v1025
        %v1122 = vpack.c.b16 %v1030, %v1026
        %v1123 = vpack.c.b16 %v1031, %v1027
        %v1124 = vpack.c.b16 %v1036, %v1032
        %v1125 = vpack.c.b16 %v1037, %v1033
        %v1126 = vpack.c.b16 %v1038, %v1034
        %v1127 = vpack.c.b16 %v1039, %v1035
        %v1128 = vpack.c.b16 %v1044, %v1040
        %v1129 = vpack.c.b16 %v1045, %v1041
        %v1130 = vpack.c.b16 %v1046, %v1042
        %v1131 = vpack.c.b16 %v1047, %v1043
        %v1132 = vpack.c.b16 %v1052, %v1048
        %v1133 = vpack.c.b16 %v1053, %v1049
        %v1134 = vpack.c.b16 %v1054, %v1050
        %v1135 = vpack.c.b16 %v1055, %v1051
        %v1136 = vpack.c.b16 %v1060, %v1056
        %v1137 = vpack.c.b16 %v1061, %v1057
        %v1138 = vpack.c.b16 %v1062, %v1058
        %v1139 = vpack.c.b16 %v1063, %v1059
        %v1140 = vpack.c.b16 %v1068, %v1064
        %v1141 = vpack.c.b16 %v1069, %v1065
        %v1142 = vpack.c.b16 %v1070, %v1066
        %v1143 = vpack.c.b16 %v1071, %v1067
        %v1144 = vpack.c.b16 %v1076, %v1072
        %v1145 = vpack.c.b16 %v1077, %v1073
        %v1146 = vpack.c.b16 %v1078, %v1074
        %v1147 = vpack.c.b16 %v1079, %v1075
        %v1148 = vpack.c.b16 %v1084, %v1080
        %v1149 = vpack.c.b16 %v1085, %v1081
        %v1150 = vpack.c.b16 %v1086, %v1082
        %v1151 = vpack.c.b16 %v1087, %v1083
        %1216 = vmatprep.subr.bf16.mxu0 %v1117
        %1217 = vmatpush1.bf16.msra.mxu0 %v1116
        %1218 = vmatprep.subr.bf16.mxu0 %v1113
        %1219 = vmatpush1.bf16.msra.mxu0 %v1112
        %1220 = vmatprep.subr.bf16.mxu0 %v1109
        %1221 = vmatpush1.bf16.msra.mxu0 %v1108
        %1222 = vmatprep.subr.bf16.mxu0 %v1105
        %1223 = vmatpush1.bf16.msra.mxu0 %v1104
        %1224 = vmatprep.subr.bf16.mxu0 %v1101
        %1225 = vmatpush1.bf16.msra.mxu0 %v1100
        %1226 = vmatprep.subr.bf16.mxu0 %v1097
        %1227 = vmatpush1.bf16.msra.mxu0 %v1096
        %1228 = vmatprep.subr.bf16.mxu0 %v1093
        %1229 = vmatpush1.bf16.msra.mxu0 %v1092
        %1230 = vmatprep.subr.bf16.mxu0 %v1089
        %1231 = vmatpush1.bf16.msra.mxu0 %v1088
        %1232 = vmatprep.subr.bf16.mxu0 %v1149
        %1233 = vmatpush2.bf16.msra.mxu0 %v1148
        %1234 = vmatprep.subr.bf16.mxu0 %v1145
        %1235 = vmatpush2.bf16.msra.mxu0 %v1144
        %1236 = vmatprep.subr.bf16.mxu0 %v1141
        %1237 = vmatpush2.bf16.msra.mxu0 %v1140
        %1238 = vmatprep.subr.bf16.mxu0 %v1137
        %1239 = vmatpush2.bf16.msra.mxu0 %v1136
        %1240 = vmatprep.subr.bf16.mxu0 %v1133
        %1241 = vmatpush2.bf16.msra.mxu0 %v1132
        %1242 = vmatprep.subr.bf16.mxu0 %v1129
        %1243 = vmatpush2.bf16.msra.mxu0 %v1128
        %1244 = vmatprep.subr.bf16.mxu0 %v1125
        %1245 = vmatpush2.bf16.msra.mxu0 %v1124
        %1246 = vmatprep.subr.bf16.mxu0 %v1121
        %1247 = vmatpush2.bf16.msra.mxu0 %v1120
        %1248 = vmatprep.mubr.bf16.mxu0 %v779
        %1249 = vmatmul.mubr.bf16.gmra.mxu0 %v778
        %v1250 = vpop.f32.mrf.mxu0
        %v1251 = vadd.f32 %v879, %v1250
        %v1252 = vpop.f32.mrf.mxu0
        %v1253 = vadd.f32 %v883, %v1252
        %v1254 = vpop.f32.mrf.mxu0
        %v1255 = vadd.f32 %v879, %v1254
        %v1256 = vpop.f32.mrf.mxu0
        %v1257 = vadd.f32 %v883, %v1256
        %1258 = vmatprep.mubr.bf16.mxu0 %v781
        %1259 = vmatmul.mubr.bf16.gmra.mxu0 %v780
        %v1260 = vpop.f32.mrf.mxu0
        %v1261 = vadd.f32 %v879, %v1260
        %v1262 = vpop.f32.mrf.mxu0
        %v1263 = vadd.f32 %v883, %v1262
        %v1264 = vpop.f32.mrf.mxu0
        %v1265 = vadd.f32 %v879, %v1264
        %v1266 = vpop.f32.mrf.mxu0
        %v1267 = vadd.f32 %v883, %v1266
        %1268 = vmatprep.mubr.bf16.mxu0 %v783
        %1269 = vmatmul.mubr.bf16.gmra.mxu0 %v782
        %v1270 = vpop.f32.mrf.mxu0
        %v1271 = vadd.f32 %v879, %v1270
        %v1272 = vpop.f32.mrf.mxu0
        %v1273 = vadd.f32 %v883, %v1272
        %v1274 = vpop.f32.mrf.mxu0
        %v1275 = vadd.f32 %v879, %v1274
        %v1276 = vpop.f32.mrf.mxu0
        %v1277 = vadd.f32 %v883, %v1276
        %1278 = vmatprep.mubr.bf16.mxu0 %v785
        %1279 = vmatmul.mubr.bf16.gmra.mxu0 %v784
        %v1280 = vpop.f32.mrf.mxu0
        %v1281 = vadd.f32 %v879, %v1280
        %v1282 = vpop.f32.mrf.mxu0
        %v1283 = vadd.f32 %v883, %v1282
        %v1284 = vpop.f32.mrf.mxu0
        %v1285 = vadd.f32 %v879, %v1284
        %v1286 = vpop.f32.mrf.mxu0
        %v1287 = vadd.f32 %v883, %v1286
        %1288 = vmatprep.mubr.bf16.mxu0 %v787
        %1289 = vmatmul.mubr.bf16.gmra.mxu0 %v786
        %v1290 = vpop.f32.mrf.mxu0
        %v1291 = vadd.f32 %v879, %v1290
        %v1292 = vpop.f32.mrf.mxu0
        %v1293 = vadd.f32 %v883, %v1292
        %v1294 = vpop.f32.mrf.mxu0
        %v1295 = vadd.f32 %v879, %v1294
        %v1296 = vpop.f32.mrf.mxu0
        %v1297 = vadd.f32 %v883, %v1296
        %1298 = vmatprep.mubr.bf16.mxu0 %v789
        %1299 = vmatmul.mubr.bf16.gmra.mxu0 %v788
        %v1300 = vpop.f32.mrf.mxu0
        %v1301 = vadd.f32 %v879, %v1300
        %v1302 = vpop.f32.mrf.mxu0
        %v1303 = vadd.f32 %v883, %v1302
        %v1304 = vpop.f32.mrf.mxu0
        %v1305 = vadd.f32 %v879, %v1304
        %v1306 = vpop.f32.mrf.mxu0
        %v1307 = vadd.f32 %v883, %v1306
        %1308 = vmatprep.mubr.bf16.mxu0 %v791
        %1309 = vmatmul.mubr.bf16.gmra.mxu0 %v790
        %v1310 = vpop.f32.mrf.mxu0
        %v1311 = vadd.f32 %v879, %v1310
        %v1312 = vpop.f32.mrf.mxu0
        %v1313 = vadd.f32 %v883, %v1312
        %v1314 = vpop.f32.mrf.mxu0
        %v1315 = vadd.f32 %v879, %v1314
        %v1316 = vpop.f32.mrf.mxu0
        %v1317 = vadd.f32 %v883, %v1316
        %1318 = vmatprep.mubr.bf16.mxu0 %v793
        %1319 = vmatmul.mubr.bf16.gmra.mxu0 %v792
        %v1320 = vpop.f32.mrf.mxu0
        %v1321 = vadd.f32 %v879, %v1320
        %v1322 = vpop.f32.mrf.mxu0
        %v1323 = vadd.f32 %v883, %v1322
        %v1324 = vpop.f32.mrf.mxu0
        %v1325 = vadd.f32 %v879, %v1324
        %v1326 = vpop.f32.mrf.mxu0
        %v1327 = vadd.f32 %v883, %v1326
        %1328 = vmatprep.mubr.bf16.mxu0 %v795
        %1329 = vmatmul.mubr.bf16.gmra.mxu0 %v794
        %v1330 = vpop.f32.mrf.mxu0
        %v1331 = vadd.f32 %v879, %v1330
        %v1332 = vpop.f32.mrf.mxu0
        %v1333 = vadd.f32 %v883, %v1332
        %v1334 = vpop.f32.mrf.mxu0
        %v1335 = vadd.f32 %v879, %v1334
        %v1336 = vpop.f32.mrf.mxu0
        %v1337 = vadd.f32 %v883, %v1336
        %1338 = vmatprep.mubr.bf16.mxu0 %v797
        %1339 = vmatmul.mubr.bf16.gmra.mxu0 %v796
        %v1340 = vpop.f32.mrf.mxu0
        %v1341 = vadd.f32 %v879, %v1340
        %v1342 = vpop.f32.mrf.mxu0
        %v1343 = vadd.f32 %v883, %v1342
        %v1344 = vpop.f32.mrf.mxu0
        %v1345 = vadd.f32 %v879, %v1344
        %v1346 = vpop.f32.mrf.mxu0
        %v1347 = vadd.f32 %v883, %v1346
        %1348 = vmatprep.mubr.bf16.mxu0 %v799
        %1349 = vmatmul.mubr.bf16.gmra.mxu0 %v798
        %v1350 = vpop.f32.mrf.mxu0
        %v1351 = vadd.f32 %v879, %v1350
        %v1352 = vpop.f32.mrf.mxu0
        %v1353 = vadd.f32 %v883, %v1352
        %v1354 = vpop.f32.mrf.mxu0
        %v1355 = vadd.f32 %v879, %v1354
        %v1356 = vpop.f32.mrf.mxu0
        %v1357 = vadd.f32 %v883, %v1356
        %1358 = vmatprep.mubr.bf16.mxu0 %v801
        %1359 = vmatmul.mubr.bf16.gmra.mxu0 %v800
        %v1360 = vpop.f32.mrf.mxu0
        %v1361 = vadd.f32 %v879, %v1360
        %v1362 = vpop.f32.mrf.mxu0
        %v1363 = vadd.f32 %v883, %v1362
        %v1364 = vpop.f32.mrf.mxu0
        %v1365 = vadd.f32 %v879, %v1364
        %v1366 = vpop.f32.mrf.mxu0
        %v1367 = vadd.f32 %v883, %v1366
        %1368 = vmatprep.mubr.bf16.mxu0 %v803
        %1369 = vmatmul.mubr.bf16.gmra.mxu0 %v802
        %v1370 = vpop.f32.mrf.mxu0
        %v1371 = vadd.f32 %v879, %v1370
        %v1372 = vpop.f32.mrf.mxu0
        %v1373 = vadd.f32 %v883, %v1372
        %v1374 = vpop.f32.mrf.mxu0
        %v1375 = vadd.f32 %v879, %v1374
        %v1376 = vpop.f32.mrf.mxu0
        %v1377 = vadd.f32 %v883, %v1376
        %1378 = vmatprep.mubr.bf16.mxu0 %v805
        %1379 = vmatmul.mubr.bf16.gmra.mxu0 %v804
        %v1380 = vpop.f32.mrf.mxu0
        %v1381 = vadd.f32 %v879, %v1380
        %v1382 = vpop.f32.mrf.mxu0
        %v1383 = vadd.f32 %v883, %v1382
        %v1384 = vpop.f32.mrf.mxu0
        %v1385 = vadd.f32 %v879, %v1384
        %v1386 = vpop.f32.mrf.mxu0
        %v1387 = vadd.f32 %v883, %v1386
        %1388 = vmatprep.mubr.bf16.mxu0 %v807
        %1389 = vmatmul.mubr.bf16.gmra.mxu0 %v806
        %v1390 = vpop.f32.mrf.mxu0
        %v1391 = vadd.f32 %v879, %v1390
        %v1392 = vpop.f32.mrf.mxu0
        %v1393 = vadd.f32 %v883, %v1392
        %v1394 = vpop.f32.mrf.mxu0
        %v1395 = vadd.f32 %v879, %v1394
        %v1396 = vpop.f32.mrf.mxu0
        %v1397 = vadd.f32 %v883, %v1396
        %1398 = vmatprep.mubr.bf16.mxu0 %v809
        %1399 = vmatmul.mubr.bf16.gmra.mxu0 %v808
        %v1400 = vpop.f32.mrf.mxu0
        %v1401 = vadd.f32 %v879, %v1400
        %v1402 = vpop.f32.mrf.mxu0
        %v1403 = vadd.f32 %v883, %v1402
        %v1404 = vpop.f32.mrf.mxu0
        %v1405 = vadd.f32 %v879, %v1404
        %v1406 = vpop.f32.mrf.mxu0
        %v1407 = vadd.f32 %v883, %v1406
        %1408 = vdwg.mxu0
        %1409 = vmatprep.subr.bf16.mxu0 %v1119
        %1410 = vmatpush1.bf16.msra.mxu0 %v1118
        %1411 = vmatprep.subr.bf16.mxu0 %v1115
        %1412 = vmatpush1.bf16.msra.mxu0 %v1114
        %1413 = vmatprep.subr.bf16.mxu0 %v1111
        %1414 = vmatpush1.bf16.msra.mxu0 %v1110
        %1415 = vmatprep.subr.bf16.mxu0 %v1107
        %1416 = vmatpush1.bf16.msra.mxu0 %v1106
        %1417 = vmatprep.subr.bf16.mxu0 %v1103
        %1418 = vmatpush1.bf16.msra.mxu0 %v1102
        %1419 = vmatprep.subr.bf16.mxu0 %v1099
        %1420 = vmatpush1.bf16.msra.mxu0 %v1098
        %1421 = vmatprep.subr.bf16.mxu0 %v1095
        %1422 = vmatpush1.bf16.msra.mxu0 %v1094
        %1423 = vmatprep.subr.bf16.mxu0 %v1091
        %1424 = vmatpush1.bf16.msra.mxu0 %v1090
        %1425 = vmatprep.subr.bf16.mxu0 %v1151
        %1426 = vmatpush2.bf16.msra.mxu0 %v1150
        %1427 = vmatprep.subr.bf16.mxu0 %v1147
        %1428 = vmatpush2.bf16.msra.mxu0 %v1146
        %1429 = vmatprep.subr.bf16.mxu0 %v1143
        %1430 = vmatpush2.bf16.msra.mxu0 %v1142
        %1431 = vmatprep.subr.bf16.mxu0 %v1139
        %1432 = vmatpush2.bf16.msra.mxu0 %v1138
        %1433 = vmatprep.subr.bf16.mxu0 %v1135
        %1434 = vmatpush2.bf16.msra.mxu0 %v1134
        %1435 = vmatprep.subr.bf16.mxu0 %v1131
        %1436 = vmatpush2.bf16.msra.mxu0 %v1130
        %1437 = vmatprep.subr.bf16.mxu0 %v1127
        %1438 = vmatpush2.bf16.msra.mxu0 %v1126
        %1439 = vmatprep.subr.bf16.mxu0 %v1123
        %1440 = vmatpush2.bf16.msra.mxu0 %v1122
        %1441 = vmatprep.mubr.bf16.mxu0 %v779
        %1442 = vmatmul.mubr.bf16.gmra.mxu0 %v778
        %v1443 = vpop.f32.mrf.mxu0
        %v1444 = vadd.f32 %v887, %v1443
        %v1445 = vpop.f32.mrf.mxu0
        %v1446 = vadd.f32 %v891, %v1445
        %v1447 = vpop.f32.mrf.mxu0
        %v1448 = vadd.f32 %v887, %v1447
        %v1449 = vpop.f32.mrf.mxu0
        %v1450 = vadd.f32 %v891, %v1449
        %1451 = vmatprep.mubr.bf16.mxu0 %v781
        %1452 = vmatmul.mubr.bf16.gmra.mxu0 %v780
        %v1453 = vpop.f32.mrf.mxu0
        %v1454 = vadd.f32 %v887, %v1453
        %v1455 = vpop.f32.mrf.mxu0
        %v1456 = vadd.f32 %v891, %v1455
        %v1457 = vpop.f32.mrf.mxu0
        %v1458 = vadd.f32 %v887, %v1457
        %v1459 = vpop.f32.mrf.mxu0
        %v1460 = vadd.f32 %v891, %v1459
        %1461 = vmatprep.mubr.bf16.mxu0 %v783
        %1462 = vmatmul.mubr.bf16.gmra.mxu0 %v782
        %v1463 = vpop.f32.mrf.mxu0
        %v1464 = vadd.f32 %v887, %v1463
        %v1465 = vpop.f32.mrf.mxu0
        %v1466 = vadd.f32 %v891, %v1465
        %v1467 = vpop.f32.mrf.mxu0
        %v1468 = vadd.f32 %v887, %v1467
        %v1469 = vpop.f32.mrf.mxu0
        %v1470 = vadd.f32 %v891, %v1469
        %1471 = vmatprep.mubr.bf16.mxu0 %v785
        %1472 = vmatmul.mubr.bf16.gmra.mxu0 %v784
        %v1473 = vpop.f32.mrf.mxu0
        %v1474 = vadd.f32 %v887, %v1473
        %v1475 = vpop.f32.mrf.mxu0
        %v1476 = vadd.f32 %v891, %v1475
        %v1477 = vpop.f32.mrf.mxu0
        %v1478 = vadd.f32 %v887, %v1477
        %v1479 = vpop.f32.mrf.mxu0
        %v1480 = vadd.f32 %v891, %v1479
        %1481 = vmatprep.mubr.bf16.mxu0 %v787
        %1482 = vmatmul.mubr.bf16.gmra.mxu0 %v786
        %v1483 = vpop.f32.mrf.mxu0
        %v1484 = vadd.f32 %v887, %v1483
        %v1485 = vpop.f32.mrf.mxu0
        %v1486 = vadd.f32 %v891, %v1485
        %v1487 = vpop.f32.mrf.mxu0
        %v1488 = vadd.f32 %v887, %v1487
        %v1489 = vpop.f32.mrf.mxu0
        %v1490 = vadd.f32 %v891, %v1489
        %1491 = vmatprep.mubr.bf16.mxu0 %v789
        %1492 = vmatmul.mubr.bf16.gmra.mxu0 %v788
        %v1493 = vpop.f32.mrf.mxu0
        %v1494 = vadd.f32 %v887, %v1493
        %v1495 = vpop.f32.mrf.mxu0
        %v1496 = vadd.f32 %v891, %v1495
        %v1497 = vpop.f32.mrf.mxu0
        %v1498 = vadd.f32 %v887, %v1497
        %v1499 = vpop.f32.mrf.mxu0
        %v1500 = vadd.f32 %v891, %v1499
        %1501 = vmatprep.mubr.bf16.mxu0 %v791
        %1502 = vmatmul.mubr.bf16.gmra.mxu0 %v790
        %v1503 = vpop.f32.mrf.mxu0
        %v1504 = vadd.f32 %v887, %v1503
        %v1505 = vpop.f32.mrf.mxu0
        %v1506 = vadd.f32 %v891, %v1505
        %v1507 = vpop.f32.mrf.mxu0
        %v1508 = vadd.f32 %v887, %v1507
        %v1509 = vpop.f32.mrf.mxu0
        %v1510 = vadd.f32 %v891, %v1509
        %1511 = vmatprep.mubr.bf16.mxu0 %v793
        %1512 = vmatmul.mubr.bf16.gmra.mxu0 %v792
        %v1513 = vpop.f32.mrf.mxu0
        %v1514 = vadd.f32 %v887, %v1513
        %v1515 = vpop.f32.mrf.mxu0
        %v1516 = vadd.f32 %v891, %v1515
        %v1517 = vpop.f32.mrf.mxu0
        %v1518 = vadd.f32 %v887, %v1517
        %v1519 = vpop.f32.mrf.mxu0
        %v1520 = vadd.f32 %v891, %v1519
        %1521 = vmatprep.mubr.bf16.mxu0 %v795
        %1522 = vmatmul.mubr.bf16.gmra.mxu0 %v794
        %v1523 = vpop.f32.mrf.mxu0
        %v1524 = vadd.f32 %v887, %v1523
        %v1525 = vpop.f32.mrf.mxu0
        %v1526 = vadd.f32 %v891, %v1525
        %v1527 = vpop.f32.mrf.mxu0
        %v1528 = vadd.f32 %v887, %v1527
        %v1529 = vpop.f32.mrf.mxu0
        %v1530 = vadd.f32 %v891, %v1529
        %1531 = vmatprep.mubr.bf16.mxu0 %v797
        %1532 = vmatmul.mubr.bf16.gmra.mxu0 %v796
        %v1533 = vpop.f32.mrf.mxu0
        %v1534 = vadd.f32 %v887, %v1533
        %v1535 = vpop.f32.mrf.mxu0
        %v1536 = vadd.f32 %v891, %v1535
        %v1537 = vpop.f32.mrf.mxu0
        %v1538 = vadd.f32 %v887, %v1537
        %v1539 = vpop.f32.mrf.mxu0
        %v1540 = vadd.f32 %v891, %v1539
        %1541 = vmatprep.mubr.bf16.mxu0 %v799
        %1542 = vmatmul.mubr.bf16.gmra.mxu0 %v798
        %v1543 = vpop.f32.mrf.mxu0
        %v1544 = vadd.f32 %v887, %v1543
        %v1545 = vpop.f32.mrf.mxu0
        %v1546 = vadd.f32 %v891, %v1545
        %v1547 = vpop.f32.mrf.mxu0
        %v1548 = vadd.f32 %v887, %v1547
        %v1549 = vpop.f32.mrf.mxu0
        %v1550 = vadd.f32 %v891, %v1549
        %1551 = vmatprep.mubr.bf16.mxu0 %v801
        %1552 = vmatmul.mubr.bf16.gmra.mxu0 %v800
        %v1553 = vpop.f32.mrf.mxu0
        %v1554 = vadd.f32 %v887, %v1553
        %v1555 = vpop.f32.mrf.mxu0
        %v1556 = vadd.f32 %v891, %v1555
        %v1557 = vpop.f32.mrf.mxu0
        %v1558 = vadd.f32 %v887, %v1557
        %v1559 = vpop.f32.mrf.mxu0
        %v1560 = vadd.f32 %v891, %v1559
        %1561 = vmatprep.mubr.bf16.mxu0 %v803
        %1562 = vmatmul.mubr.bf16.gmra.mxu0 %v802
        %v1563 = vpop.f32.mrf.mxu0
        %v1564 = vadd.f32 %v887, %v1563
        %v1565 = vpop.f32.mrf.mxu0
        %v1566 = vadd.f32 %v891, %v1565
        %v1567 = vpop.f32.mrf.mxu0
        %v1568 = vadd.f32 %v887, %v1567
        %v1569 = vpop.f32.mrf.mxu0
        %v1570 = vadd.f32 %v891, %v1569
        %1571 = vmatprep.mubr.bf16.mxu0 %v805
        %1572 = vmatmul.mubr.bf16.gmra.mxu0 %v804
        %v1573 = vpop.f32.mrf.mxu0
        %v1574 = vadd.f32 %v887, %v1573
        %v1575 = vpop.f32.mrf.mxu0
        %v1576 = vadd.f32 %v891, %v1575
        %v1577 = vpop.f32.mrf.mxu0
        %v1578 = vadd.f32 %v887, %v1577
        %v1579 = vpop.f32.mrf.mxu0
        %v1580 = vadd.f32 %v891, %v1579
        %1581 = vmatprep.mubr.bf16.mxu0 %v807
        %1582 = vmatmul.mubr.bf16.gmra.mxu0 %v806
        %v1583 = vpop.f32.mrf.mxu0
        %v1584 = vadd.f32 %v887, %v1583
        %v1585 = vpop.f32.mrf.mxu0
        %v1586 = vadd.f32 %v891, %v1585
        %v1587 = vpop.f32.mrf.mxu0
        %v1588 = vadd.f32 %v887, %v1587
        %v1589 = vpop.f32.mrf.mxu0
        %v1590 = vadd.f32 %v891, %v1589
        %1591 = vmatprep.mubr.bf16.mxu0 %v809
        %1592 = vmatmul.mubr.bf16.gmra.mxu0 %v808
        %v1593 = vpop.f32.mrf.mxu0
        %v1594 = vadd.f32 %v887, %v1593
        %v1595 = vpop.f32.mrf.mxu0
        %v1596 = vadd.f32 %v891, %v1595
        %v1597 = vpop.f32.mrf.mxu0
        %v1598 = vadd.f32 %v887, %v1597
        %v1599 = vpop.f32.mrf.mxu0
        %v1600 = vadd.f32 %v891, %v1599
        %1601 = vdwg.mxu0
        %v1602 = vsel %vm247, 1, 0
        %v1603 = vsel %vm248, 1, 0
        %v1604 = vsel %vm249, 1, 0
        %v1605 = vsel %vm250, 1, 0
        %v1606 = vsel %vm251, 1, 0
        %v1607 = vsel %vm252, 1, 0
        %v1608 = vsel %vm253, 1, 0
        %v1609 = vsel %vm254, 1, 0
        %v1610 = vsel %vm255, 1, 0
        %v1611 = vsel %vm256, 1, 0
        %v1612 = vsel %vm257, 1, 0
        %v1613 = vsel %vm258, 1, 0
        %v1614 = vsel %vm259, 1, 0
        %v1615 = vsel %vm260, 1, 0
        %v1616 = vsel %vm261, 1, 0
        %v1617 = vsel %vm262, 1, 0
        %v1618 = vsel %vm263, 1, 0
        %v1619 = vsel %vm264, 1, 0
        %v1620 = vsel %vm265, 1, 0
        %v1621 = vsel %vm266, 1, 0
        %v1622 = vsel %vm267, 1, 0
        %v1623 = vsel %vm268, 1, 0
        %v1624 = vsel %vm269, 1, 0
        %v1625 = vsel %vm270, 1, 0
        %v1626 = vsel %vm271, 1, 0
        %v1627 = vsel %vm272, 1, 0
        %v1628 = vsel %vm273, 1, 0
        %v1629 = vsel %vm274, 1, 0
        %v1630 = vsel %vm275, 1, 0
        %v1631 = vsel %vm276, 1, 0
        %v1632 = vsel %vm277, 1, 0
        %v1633 = vsel %vm278, 1, 0
        %1634 = vset.pattern.permute.xlu0 0
        %1635 = vperm.xlu0 %1634, %v1602
        %v1636 = vpop.permute.xlu0 %1635
        %1637 = vset.pattern.permute.xlu0 0
        %1638 = vperm.xlu0 %1637, %v1603
        %v1639 = vpop.permute.xlu0 %1638
        %1640 = vset.pattern.permute.xlu0 0
        %1641 = vperm.xlu0 %1640, %v1604
        %v1642 = vpop.permute.xlu0 %1641
        %1643 = vset.pattern.permute.xlu0 0
        %1644 = vperm.xlu0 %1643, %v1605
        %v1645 = vpop.permute.xlu0 %1644
        %1646 = vset.pattern.permute.xlu0 0
        %1647 = vperm.xlu0 %1646, %v1606
        %v1648 = vpop.permute.xlu0 %1647
        %1649 = vset.pattern.permute.xlu0 0
        %1650 = vperm.xlu0 %1649, %v1607
        %v1651 = vpop.permute.xlu0 %1650
        %1652 = vset.pattern.permute.xlu0 0
        %1653 = vperm.xlu0 %1652, %v1608
        %v1654 = vpop.permute.xlu0 %1653
        %1655 = vset.pattern.permute.xlu0 0
        %1656 = vperm.xlu0 %1655, %v1609
        %v1657 = vpop.permute.xlu0 %1656
        %1658 = vset.pattern.permute.xlu0 0
        %1659 = vperm.xlu0 %1658, %v1610
        %v1660 = vpop.permute.xlu0 %1659
        %1661 = vset.pattern.permute.xlu0 0
        %1662 = vperm.xlu0 %1661, %v1611
        %v1663 = vpop.permute.xlu0 %1662
        %1664 = vset.pattern.permute.xlu0 0
        %1665 = vperm.xlu0 %1664, %v1612
        %v1666 = vpop.permute.xlu0 %1665
        %1667 = vset.pattern.permute.xlu0 0
        %1668 = vperm.xlu0 %1667, %v1613
        %v1669 = vpop.permute.xlu0 %1668
        %1670 = vset.pattern.permute.xlu0 0
        %1671 = vperm.xlu0 %1670, %v1614
        %v1672 = vpop.permute.xlu0 %1671
        %1673 = vset.pattern.permute.xlu0 0
        %1674 = vperm.xlu0 %1673, %v1615
        %v1675 = vpop.permute.xlu0 %1674
        %1676 = vset.pattern.permute.xlu0 0
        %1677 = vperm.xlu0 %1676, %v1616
        %v1678 = vpop.permute.xlu0 %1677
        %1679 = vset.pattern.permute.xlu0 0
        %1680 = vperm.xlu0 %1679, %v1617
        %v1681 = vpop.permute.xlu0 %1680
        %1682 = vset.pattern.permute.xlu0 0
        %1683 = vperm.xlu0 %1682, %v1618
        %v1684 = vpop.permute.xlu0 %1683
        %1685 = vset.pattern.permute.xlu0 0
        %1686 = vperm.xlu0 %1685, %v1619
        %v1687 = vpop.permute.xlu0 %1686
        %1688 = vset.pattern.permute.xlu0 0
        %1689 = vperm.xlu0 %1688, %v1620
        %v1690 = vpop.permute.xlu0 %1689
        %1691 = vset.pattern.permute.xlu0 0
        %1692 = vperm.xlu0 %1691, %v1621
        %v1693 = vpop.permute.xlu0 %1692
        %1694 = vset.pattern.permute.xlu0 0
        %1695 = vperm.xlu0 %1694, %v1622
        %v1696 = vpop.permute.xlu0 %1695
        %1697 = vset.pattern.permute.xlu0 0
        %1698 = vperm.xlu0 %1697, %v1623
        %v1699 = vpop.permute.xlu0 %1698
        %1700 = vset.pattern.permute.xlu0 0
        %1701 = vperm.xlu0 %1700, %v1624
        %v1702 = vpop.permute.xlu0 %1701
        %1703 = vset.pattern.permute.xlu0 0
        %1704 = vperm.xlu0 %1703, %v1625
        %v1705 = vpop.permute.xlu0 %1704
        %1706 = vset.pattern.permute.xlu0 0
        %1707 = vperm.xlu0 %1706, %v1626
        %v1708 = vpop.permute.xlu0 %1707
        %1709 = vset.pattern.permute.xlu0 0
        %1710 = vperm.xlu0 %1709, %v1627
        %v1711 = vpop.permute.xlu0 %1710
        %1712 = vset.pattern.permute.xlu0 0
        %1713 = vperm.xlu0 %1712, %v1628
        %v1714 = vpop.permute.xlu0 %1713
        %1715 = vset.pattern.permute.xlu0 0
        %1716 = vperm.xlu0 %1715, %v1629
        %v1717 = vpop.permute.xlu0 %1716
        %1718 = vset.pattern.permute.xlu0 0
        %1719 = vperm.xlu0 %1718, %v1630
        %v1720 = vpop.permute.xlu0 %1719
        %1721 = vset.pattern.permute.xlu0 0
        %1722 = vperm.xlu0 %1721, %v1631
        %v1723 = vpop.permute.xlu0 %1722
        %1724 = vset.pattern.permute.xlu0 0
        %1725 = vperm.xlu0 %1724, %v1632
        %v1726 = vpop.permute.xlu0 %1725
        %1727 = vset.pattern.permute.xlu0 0
        %1728 = vperm.xlu0 %1727, %v1633
        %v1729 = vpop.permute.xlu0 %1728
        %vm1730 = vcmp.eq.s32.totalorder %v1636, 1
        %vm1731 = vcmp.eq.s32.totalorder %v1639, 1
        %vm1732 = vcmp.eq.s32.totalorder %v1642, 1
        %vm1733 = vcmp.eq.s32.totalorder %v1645, 1
        %vm1734 = vcmp.eq.s32.totalorder %v1648, 1
        %vm1735 = vcmp.eq.s32.totalorder %v1651, 1
        %vm1736 = vcmp.eq.s32.totalorder %v1654, 1
        %vm1737 = vcmp.eq.s32.totalorder %v1657, 1
        %vm1738 = vcmp.eq.s32.totalorder %v1660, 1
        %vm1739 = vcmp.eq.s32.totalorder %v1663, 1
        %vm1740 = vcmp.eq.s32.totalorder %v1666, 1
        %vm1741 = vcmp.eq.s32.totalorder %v1669, 1
        %vm1742 = vcmp.eq.s32.totalorder %v1672, 1
        %vm1743 = vcmp.eq.s32.totalorder %v1675, 1
        %vm1744 = vcmp.eq.s32.totalorder %v1678, 1
        %vm1745 = vcmp.eq.s32.totalorder %v1681, 1
        %vm1746 = vcmp.eq.s32.totalorder %v1684, 1
        %vm1747 = vcmp.eq.s32.totalorder %v1687, 1
        %vm1748 = vcmp.eq.s32.totalorder %v1690, 1
        %vm1749 = vcmp.eq.s32.totalorder %v1693, 1
        %vm1750 = vcmp.eq.s32.totalorder %v1696, 1
        %vm1751 = vcmp.eq.s32.totalorder %v1699, 1
        %vm1752 = vcmp.eq.s32.totalorder %v1702, 1
        %vm1753 = vcmp.eq.s32.totalorder %v1705, 1
        %vm1754 = vcmp.eq.s32.totalorder %v1708, 1
        %vm1755 = vcmp.eq.s32.totalorder %v1711, 1
        %vm1756 = vcmp.eq.s32.totalorder %v1714, 1
        %vm1757 = vcmp.eq.s32.totalorder %v1717, 1
        %vm1758 = vcmp.eq.s32.totalorder %v1720, 1
        %vm1759 = vcmp.eq.s32.totalorder %v1723, 1
        %vm1760 = vcmp.eq.s32.totalorder %v1726, 1
        %vm1761 = vcmp.eq.s32.totalorder %v1729, 1
        %v1762 = vsel %vm1730, %v1251, 0.0
        %v1763 = vsel %vm1730, %v1253, 0.0
        %v1764 = vsel %vm1730, %v1444, 0.0
        %v1765 = vsel %vm1730, %v1446, 0.0
        %v1766 = vsel %vm1731, %v1255, 0.0
        %v1767 = vsel %vm1731, %v1257, 0.0
        %v1768 = vsel %vm1731, %v1448, 0.0
        %v1769 = vsel %vm1731, %v1450, 0.0
        %v1770 = vsel %vm1732, %v1261, 0.0
        %v1771 = vsel %vm1732, %v1263, 0.0
        %v1772 = vsel %vm1732, %v1454, 0.0
        %v1773 = vsel %vm1732, %v1456, 0.0
        %v1774 = vsel %vm1733, %v1265, 0.0
        %v1775 = vsel %vm1733, %v1267, 0.0
        %v1776 = vsel %vm1733, %v1458, 0.0
        %v1777 = vsel %vm1733, %v1460, 0.0
        %v1778 = vsel %vm1734, %v1271, 0.0
        %v1779 = vsel %vm1734, %v1273, 0.0
        %v1780 = vsel %vm1734, %v1464, 0.0
        %v1781 = vsel %vm1734, %v1466, 0.0
        %v1782 = vsel %vm1735, %v1275, 0.0
        %v1783 = vsel %vm1735, %v1277, 0.0
        %v1784 = vsel %vm1735, %v1468, 0.0
        %v1785 = vsel %vm1735, %v1470, 0.0
        %v1786 = vsel %vm1736, %v1281, 0.0
        %v1787 = vsel %vm1736, %v1283, 0.0
        %v1788 = vsel %vm1736, %v1474, 0.0
        %v1789 = vsel %vm1736, %v1476, 0.0
        %v1790 = vsel %vm1737, %v1285, 0.0
        %v1791 = vsel %vm1737, %v1287, 0.0
        %v1792 = vsel %vm1737, %v1478, 0.0
        %v1793 = vsel %vm1737, %v1480, 0.0
        %v1794 = vsel %vm1738, %v1291, 0.0
        %v1795 = vsel %vm1738, %v1293, 0.0
        %v1796 = vsel %vm1738, %v1484, 0.0
        %v1797 = vsel %vm1738, %v1486, 0.0
        %v1798 = vsel %vm1739, %v1295, 0.0
        %v1799 = vsel %vm1739, %v1297, 0.0
        %v1800 = vsel %vm1739, %v1488, 0.0
        %v1801 = vsel %vm1739, %v1490, 0.0
        %v1802 = vsel %vm1740, %v1301, 0.0
        %v1803 = vsel %vm1740, %v1303, 0.0
        %v1804 = vsel %vm1740, %v1494, 0.0
        %v1805 = vsel %vm1740, %v1496, 0.0
        %v1806 = vsel %vm1741, %v1305, 0.0
        %v1807 = vsel %vm1741, %v1307, 0.0
        %v1808 = vsel %vm1741, %v1498, 0.0
        %v1809 = vsel %vm1741, %v1500, 0.0
        %v1810 = vsel %vm1742, %v1311, 0.0
        %v1811 = vsel %vm1742, %v1313, 0.0
        %v1812 = vsel %vm1742, %v1504, 0.0
        %v1813 = vsel %vm1742, %v1506, 0.0
        %v1814 = vsel %vm1743, %v1315, 0.0
        %v1815 = vsel %vm1743, %v1317, 0.0
        %v1816 = vsel %vm1743, %v1508, 0.0
        %v1817 = vsel %vm1743, %v1510, 0.0
        %v1818 = vsel %vm1744, %v1321, 0.0
        %v1819 = vsel %vm1744, %v1323, 0.0
        %v1820 = vsel %vm1744, %v1514, 0.0
        %v1821 = vsel %vm1744, %v1516, 0.0
        %v1822 = vsel %vm1745, %v1325, 0.0
        %v1823 = vsel %vm1745, %v1327, 0.0
        %v1824 = vsel %vm1745, %v1518, 0.0
        %v1825 = vsel %vm1745, %v1520, 0.0
        %v1826 = vsel %vm1746, %v1331, 0.0
        %v1827 = vsel %vm1746, %v1333, 0.0
        %v1828 = vsel %vm1746, %v1524, 0.0
        %v1829 = vsel %vm1746, %v1526, 0.0
        %v1830 = vsel %vm1747, %v1335, 0.0
        %v1831 = vsel %vm1747, %v1337, 0.0
        %v1832 = vsel %vm1747, %v1528, 0.0
        %v1833 = vsel %vm1747, %v1530, 0.0
        %v1834 = vsel %vm1748, %v1341, 0.0
        %v1835 = vsel %vm1748, %v1343, 0.0
        %v1836 = vsel %vm1748, %v1534, 0.0
        %v1837 = vsel %vm1748, %v1536, 0.0
        %v1838 = vsel %vm1749, %v1345, 0.0
        %v1839 = vsel %vm1749, %v1347, 0.0
        %v1840 = vsel %vm1749, %v1538, 0.0
        %v1841 = vsel %vm1749, %v1540, 0.0
        %v1842 = vsel %vm1750, %v1351, 0.0
        %v1843 = vsel %vm1750, %v1353, 0.0
        %v1844 = vsel %vm1750, %v1544, 0.0
        %v1845 = vsel %vm1750, %v1546, 0.0
        %v1846 = vsel %vm1751, %v1355, 0.0
        %v1847 = vsel %vm1751, %v1357, 0.0
        %v1848 = vsel %vm1751, %v1548, 0.0
        %v1849 = vsel %vm1751, %v1550, 0.0
        %v1850 = vsel %vm1752, %v1361, 0.0
        %v1851 = vsel %vm1752, %v1363, 0.0
        %v1852 = vsel %vm1752, %v1554, 0.0
        %v1853 = vsel %vm1752, %v1556, 0.0
        %v1854 = vsel %vm1753, %v1365, 0.0
        %v1855 = vsel %vm1753, %v1367, 0.0
        %v1856 = vsel %vm1753, %v1558, 0.0
        %v1857 = vsel %vm1753, %v1560, 0.0
        %v1858 = vsel %vm1754, %v1371, 0.0
        %v1859 = vsel %vm1754, %v1373, 0.0
        %v1860 = vsel %vm1754, %v1564, 0.0
        %v1861 = vsel %vm1754, %v1566, 0.0
        %v1862 = vsel %vm1755, %v1375, 0.0
        %v1863 = vsel %vm1755, %v1377, 0.0
        %v1864 = vsel %vm1755, %v1568, 0.0
        %v1865 = vsel %vm1755, %v1570, 0.0
        %v1866 = vsel %vm1756, %v1381, 0.0
        %v1867 = vsel %vm1756, %v1383, 0.0
        %v1868 = vsel %vm1756, %v1574, 0.0
        %v1869 = vsel %vm1756, %v1576, 0.0
        %v1870 = vsel %vm1757, %v1385, 0.0
        %v1871 = vsel %vm1757, %v1387, 0.0
        %v1872 = vsel %vm1757, %v1578, 0.0
        %v1873 = vsel %vm1757, %v1580, 0.0
        %v1874 = vsel %vm1758, %v1391, 0.0
        %v1875 = vsel %vm1758, %v1393, 0.0
        %v1876 = vsel %vm1758, %v1584, 0.0
        %v1877 = vsel %vm1758, %v1586, 0.0
        %v1878 = vsel %vm1759, %v1395, 0.0
        %v1879 = vsel %vm1759, %v1397, 0.0
        %v1880 = vsel %vm1759, %v1588, 0.0
        %v1881 = vsel %vm1759, %v1590, 0.0
        %v1882 = vsel %vm1760, %v1401, 0.0
        %v1883 = vsel %vm1760, %v1403, 0.0
        %v1884 = vsel %vm1760, %v1594, 0.0
        %v1885 = vsel %vm1760, %v1596, 0.0
        %v1886 = vsel %vm1761, %v1405, 0.0
        %v1887 = vsel %vm1761, %v1407, 0.0
        %v1888 = vsel %vm1761, %v1598, 0.0
        %v1889 = vsel %vm1761, %v1600, 0.0
        %1890 = vst [vmem:[%s206] sm:$0xff] %v1762
        %1891 = vst [vmem:[%s206 + $0x8] sm:$0xff] %v1763
        %1892 = vst [vmem:[%s206 + $0x10] sm:$0xff] %v1766
        %1893 = vst [vmem:[%s206 + $0x18] sm:$0xff] %v1767
        %1894 = vst [vmem:[%s206 + $0x20] sm:$0xff] %v1770
        %1895 = vst [vmem:[%s206 + $0x28] sm:$0xff] %v1771
        %1896 = vst [vmem:[%s206 + $0x30] sm:$0xff] %v1774
        %1897 = vst [vmem:[%s206 + $0x38] sm:$0xff] %v1775
        %1898 = vst [vmem:[%s206 + $0x40] sm:$0xff] %v1778
        %1899 = vst [vmem:[%s206 + $0x48] sm:$0xff] %v1779
        %1900 = vst [vmem:[%s206 + $0x50] sm:$0xff] %v1782
        %1901 = vst [vmem:[%s206 + $0x58] sm:$0xff] %v1783
        %1902 = vst [vmem:[%s206 + $0x60] sm:$0xff] %v1786
        %1903 = vst [vmem:[%s206 + $0x68] sm:$0xff] %v1787
        %1904 = vst [vmem:[%s206 + $0x70] sm:$0xff] %v1790
        %1905 = vst [vmem:[%s206 + $0x78] sm:$0xff] %v1791
        %1906 = vst [vmem:[%s206 + $0x100] sm:$0xff] %v1794
        %1907 = vst [vmem:[%s206 + $0x108] sm:$0xff] %v1795
        %1908 = vst [vmem:[%s206 + $0x110] sm:$0xff] %v1798
        %1909 = vst [vmem:[%s206 + $0x118] sm:$0xff] %v1799
        %1910 = vst [vmem:[%s206 + $0x120] sm:$0xff] %v1802
        %1911 = vst [vmem:[%s206 + $0x128] sm:$0xff] %v1803
        %1912 = vst [vmem:[%s206 + $0x130] sm:$0xff] %v1806
        %1913 = vst [vmem:[%s206 + $0x138] sm:$0xff] %v1807
        %1914 = vst [vmem:[%s206 + $0x140] sm:$0xff] %v1810
        %1915 = vst [vmem:[%s206 + $0x148] sm:$0xff] %v1811
        %1916 = vst [vmem:[%s206 + $0x150] sm:$0xff] %v1814
        %1917 = vst [vmem:[%s206 + $0x158] sm:$0xff] %v1815
        %1918 = vst [vmem:[%s206 + $0x160] sm:$0xff] %v1818
        %1919 = vst [vmem:[%s206 + $0x168] sm:$0xff] %v1819
        %1920 = vst [vmem:[%s206 + $0x170] sm:$0xff] %v1822
        %1921 = vst [vmem:[%s206 + $0x178] sm:$0xff] %v1823
        %1922 = vst [vmem:[%s206 + $0x200] sm:$0xff] %v1826
        %1923 = vst [vmem:[%s206 + $0x208] sm:$0xff] %v1827
        %1924 = vst [vmem:[%s206 + $0x210] sm:$0xff] %v1830
        %1925 = vst [vmem:[%s206 + $0x218] sm:$0xff] %v1831
        %1926 = vst [vmem:[%s206 + $0x220] sm:$0xff] %v1834
        %1927 = vst [vmem:[%s206 + $0x228] sm:$0xff] %v1835
        %1928 = vst [vmem:[%s206 + $0x230] sm:$0xff] %v1838
        %1929 = vst [vmem:[%s206 + $0x238] sm:$0xff] %v1839
        %1930 = vst [vmem:[%s206 + $0x240] sm:$0xff] %v1842
        %1931 = vst [vmem:[%s206 + $0x248] sm:$0xff] %v1843
        %1932 = vst [vmem:[%s206 + $0x250] sm:$0xff] %v1846
        %1933 = vst [vmem:[%s206 + $0x258] sm:$0xff] %v1847
        %1934 = vst [vmem:[%s206 + $0x260] sm:$0xff] %v1850
        %1935 = vst [vmem:[%s206 + $0x268] sm:$0xff] %v1851
        %1936 = vst [vmem:[%s206 + $0x270] sm:$0xff] %v1854
        %1937 = vst [vmem:[%s206 + $0x278] sm:$0xff] %v1855
        %1938 = vst [vmem:[%s206 + $0x300] sm:$0xff] %v1858
        %1939 = vst [vmem:[%s206 + $0x308] sm:$0xff] %v1859
        %1940 = vst [vmem:[%s206 + $0x310] sm:$0xff] %v1862
        %1941 = vst [vmem:[%s206 + $0x318] sm:$0xff] %v1863
        %1942 = vst [vmem:[%s206 + $0x320] sm:$0xff] %v1866
        %1943 = vst [vmem:[%s206 + $0x328] sm:$0xff] %v1867
        %1944 = vst [vmem:[%s206 + $0x330] sm:$0xff] %v1870
        %1945 = vst [vmem:[%s206 + $0x338] sm:$0xff] %v1871
        %1946 = vst [vmem:[%s206 + $0x340] sm:$0xff] %v1874
        %1947 = vst [vmem:[%s206 + $0x348] sm:$0xff] %v1875
        %1948 = vst [vmem:[%s206 + $0x350] sm:$0xff] %v1878
        %1949 = vst [vmem:[%s206 + $0x358] sm:$0xff] %v1879
        %1950 = vst [vmem:[%s206 + $0x360] sm:$0xff] %v1882
        %1951 = vst [vmem:[%s206 + $0x368] sm:$0xff] %v1883
        %1952 = vst [vmem:[%s206 + $0x370] sm:$0xff] %v1886
        %1953 = vst [vmem:[%s206 + $0x378] sm:$0xff] %v1887
        %s1954 = scalar_lea.vmem %s206, 128 [#allocation5]
        %1955 = vst [vmem:[%s1954] sm:$0xff] %v1764
        %1956 = vst [vmem:[%s1954 + $0x8] sm:$0xff] %v1765
        %1957 = vst [vmem:[%s1954 + $0x10] sm:$0xff] %v1768
        %1958 = vst [vmem:[%s1954 + $0x18] sm:$0xff] %v1769
        %1959 = vst [vmem:[%s1954 + $0x20] sm:$0xff] %v1772
        %1960 = vst [vmem:[%s1954 + $0x28] sm:$0xff] %v1773
        %1961 = vst [vmem:[%s1954 + $0x30] sm:$0xff] %v1776
        %1962 = vst [vmem:[%s1954 + $0x38] sm:$0xff] %v1777
        %1963 = vst [vmem:[%s1954 + $0x40] sm:$0xff] %v1780
        %1964 = vst [vmem:[%s1954 + $0x48] sm:$0xff] %v1781
        %1965 = vst [vmem:[%s1954 + $0x50] sm:$0xff] %v1784
        %1966 = vst [vmem:[%s1954 + $0x58] sm:$0xff] %v1785
        %1967 = vst [vmem:[%s1954 + $0x60] sm:$0xff] %v1788
        %1968 = vst [vmem:[%s1954 + $0x68] sm:$0xff] %v1789
        %1969 = vst [vmem:[%s1954 + $0x70] sm:$0xff] %v1792
        %1970 = vst [vmem:[%s1954 + $0x78] sm:$0xff] %v1793
        %1971 = vst [vmem:[%s1954 + $0x100] sm:$0xff] %v1796
        %1972 = vst [vmem:[%s1954 + $0x108] sm:$0xff] %v1797
        %1973 = vst [vmem:[%s1954 + $0x110] sm:$0xff] %v1800
        %1974 = vst [vmem:[%s1954 + $0x118] sm:$0xff] %v1801
        %1975 = vst [vmem:[%s1954 + $0x120] sm:$0xff] %v1804
        %1976 = vst [vmem:[%s1954 + $0x128] sm:$0xff] %v1805
        %1977 = vst [vmem:[%s1954 + $0x130] sm:$0xff] %v1808
        %1978 = vst [vmem:[%s1954 + $0x138] sm:$0xff] %v1809
        %1979 = vst [vmem:[%s1954 + $0x140] sm:$0xff] %v1812
        %1980 = vst [vmem:[%s1954 + $0x148] sm:$0xff] %v1813
        %1981 = vst [vmem:[%s1954 + $0x150] sm:$0xff] %v1816
        %1982 = vst [vmem:[%s1954 + $0x158] sm:$0xff] %v1817
        %1983 = vst [vmem:[%s1954 + $0x160] sm:$0xff] %v1820
        %1984 = vst [vmem:[%s1954 + $0x168] sm:$0xff] %v1821
        %1985 = vst [vmem:[%s1954 + $0x170] sm:$0xff] %v1824
        %1986 = vst [vmem:[%s1954 + $0x178] sm:$0xff] %v1825
        %1987 = vst [vmem:[%s1954 + $0x200] sm:$0xff] %v1828
        %1988 = vst [vmem:[%s1954 + $0x208] sm:$0xff] %v1829
        %1989 = vst [vmem:[%s1954 + $0x210] sm:$0xff] %v1832
        %1990 = vst [vmem:[%s1954 + $0x218] sm:$0xff] %v1833
        %1991 = vst [vmem:[%s1954 + $0x220] sm:$0xff] %v1836
        %1992 = vst [vmem:[%s1954 + $0x228] sm:$0xff] %v1837
        %1993 = vst [vmem:[%s1954 + $0x230] sm:$0xff] %v1840
        %1994 = vst [vmem:[%s1954 + $0x238] sm:$0xff] %v1841
        %1995 = vst [vmem:[%s1954 + $0x240] sm:$0xff] %v1844
        %1996 = vst [vmem:[%s1954 + $0x248] sm:$0xff] %v1845
        %1997 = vst [vmem:[%s1954 + $0x250] sm:$0xff] %v1848
        %1998 = vst [vmem:[%s1954 + $0x258] sm:$0xff] %v1849
        %1999 = vst [vmem:[%s1954 + $0x260] sm:$0xff] %v1852
        %2000 = vst [vmem:[%s1954 + $0x268] sm:$0xff] %v1853
        %2001 = vst [vmem:[%s1954 + $0x270] sm:$0xff] %v1856
        %2002 = vst [vmem:[%s1954 + $0x278] sm:$0xff] %v1857
        %2003 = vst [vmem:[%s1954 + $0x300] sm:$0xff] %v1860
        %2004 = vst [vmem:[%s1954 + $0x308] sm:$0xff] %v1861
        %2005 = vst [vmem:[%s1954 + $0x310] sm:$0xff] %v1864
        %2006 = vst [vmem:[%s1954 + $0x318] sm:$0xff] %v1865
        %2007 = vst [vmem:[%s1954 + $0x320] sm:$0xff] %v1868
        %2008 = vst [vmem:[%s1954 + $0x328] sm:$0xff] %v1869
        %2009 = vst [vmem:[%s1954 + $0x330] sm:$0xff] %v1872
        %2010 = vst [vmem:[%s1954 + $0x338] sm:$0xff] %v1873
        %2011 = vst [vmem:[%s1954 + $0x340] sm:$0xff] %v1876
        %2012 = vst [vmem:[%s1954 + $0x348] sm:$0xff] %v1877
        %2013 = vst [vmem:[%s1954 + $0x350] sm:$0xff] %v1880
        %2014 = vst [vmem:[%s1954 + $0x358] sm:$0xff] %v1881
        %2015 = vst [vmem:[%s1954 + $0x360] sm:$0xff] %v1884
        %2016 = vst [vmem:[%s1954 + $0x368] sm:$0xff] %v1885
        %2017 = vst [vmem:[%s1954 + $0x370] sm:$0xff] %v1888
        %2018 = vst [vmem:[%s1954 + $0x378] sm:$0xff] %v1889
        %s2019 = sand.u32 %s116, 1
        %s2020 = scalar_lea.sflag [#allocation4], %s2019
        %s2021 = sand.u32 %s116, 1
        %s2022 = smul.addr %s2021, 1024
        %s2023 = scalar_lea.vmem [#allocation5], %s2022
        // Predicated region
        $region41: #{tpu_custom_call.1} parent=35 // pred_check
          %p2024 = pneg %p126
        $region42: #{tpu_custom_call.1} parent=35 // pred_check_branch
          %2026 = sbr.rel (%p2024) target = $region44
        $region43: #{tpu_custom_call.1} parent=35 // pred_region
          %s2027 = smul.u32 4, %s19
          %s2029 = ssub.s32 16384, 16384
          %2030 = vsyncadd %s2020, %s2029
          %s2031 = smul.addr %s2027, 32
          %s2032 = smul.addr %s2031, 128
          %s2033 = scalar_lea.hbm %s4, %s2032
          %s2034 = sshll.u32 %s2023, 4
          %s2035 = int_to_ptr.vmem [resolvable:$true] %s2034
          %2040 = dma.vmem_to_hbm [thread:$0]  %s2035, 16384, %s2033, %s2020, 256, 256, 16
        $region44: #{tpu_custom_call.1} parent=35 // pred_fallthru
          _
      $region36: #{tpu_custom_call.1} parent=5 // pred_fallthru
        _
      %p2041 = scmp.le.s32.totalorder 2, %s14
      // Predicated region
      $region45: #{tpu_custom_call.1} parent=5 // pred_check
        %p2042 = pneg %p2041
      $region46: #{tpu_custom_call.1} parent=5 // pred_check_branch
        %2044 = sbr.rel (%p2042) target = $region48
      $region47: #{tpu_custom_call.1} parent=5 // pred_region
        %s2045 = ssub.s32 %s14, 2
        // Predicated region
        $region49: #{tpu_custom_call.1} parent=47 // pred_check
          %p2046 = pneg %p132
        $region50: #{tpu_custom_call.1} parent=47 // pred_check_branch
          %2048 = sbr.rel (%p2046) target = $region52
        $region51: #{tpu_custom_call.1} parent=47 // pred_region
          %s2049 = sand.u32 %s117, 1
          %s2050 = scalar_lea.sflag [#allocation4], %s2049
          %s2051 = sand.u32 %s117, 1
          %s2052 = smul.addr %s2051, 1024
          %s2053 = scalar_lea.vmem [#allocation5], %s2052
          %2054 = dma.done %s2050, 16384
        $region52: #{tpu_custom_call.1} parent=47 // pred_fallthru
          _
      $region48: #{tpu_custom_call.1} parent=5 // pred_fallthru
        _
    $region6: #{tpu_custom_call.1} parent=1 // loop_footer
      %s18 = sadd.s32 1, %s14
    $region7: #{tpu_custom_call.1} parent=1 // loop_footer_branch
      %13 = sbr.rel target = $region3
    $region8: #{tpu_custom_call.1} parent=1 // loop_exit
      _
    %2055 = vsyncpa [#allocation3], 1
    %s2056 = scalar_lea.sflag [#allocation3], 1
    %2057 = vsyncpa %s2056, 1
    %2058 = vsyncpa [#allocation4], 1
    %s2059 = scalar_lea.sflag [#allocation4], 1
    %2060 = vsyncpa %s2059, 1

</llo_original>
